<compile_context>
chip_gen: v6e
topology: v6e:2x2x1
jax: 0.10.0
libtpu: 0.0.40
codegen_flags: <defaults>
</compile_context>

<pallas_src>
import functools
import math

import jax
import jax.numpy as jnp
from jax.experimental import pallas as pl
from jax.experimental.pallas import tpu as pltpu

HIDDEN1_UNITS = 300
HIDDEN2_UNITS = 600

_LANE = 128
_SUBLANE = 8
_HALF_LOG_2PI = 0.5 * math.log(2.0 * math.pi)


def _round_up(n, m):
    return ((n + m - 1) // m) * m


def actor_kernel(x_ref, w1_ref, b1_ref, w2_ref, b2_ref,
                 wmu_ref, bmu_ref, wstd_ref, bstd_ref, eps_ref,
                 action_ref, logp_ref):
    # Matmuls: bf16 inputs, f32 accumulation (native MXU path).
    x = x_ref[...]
    h1 = jnp.dot(x, w1_ref[...], preferred_element_type=jnp.float32) + b1_ref[...]
    h1 = jnp.maximum(h1, 0.0).astype(jnp.bfloat16)

    h2 = jnp.dot(h1, w2_ref[...], preferred_element_type=jnp.float32) + b2_ref[...]
    h2 = jnp.maximum(h2, 0.0).astype(jnp.bfloat16)

    mu = jnp.dot(h2, wmu_ref[...], preferred_element_type=jnp.float32) + bmu_ref[...]
    std_pre = (jnp.dot(h2, wstd_ref[...], preferred_element_type=jnp.float32)
               + bstd_ref[...])
    std = jnp.logaddexp(std_pre, 0.0)          # stable softplus

    eps = eps_ref[...]
    sample = mu + std * eps                    # dist.rsample()

    # Normal(mu, std).log_prob(sample): (sample - mu)/std == eps exactly.
    log_prob = -0.5 * eps * eps - jnp.log(std) - _HALF_LOG_2PI

    # tanh squash + correction (double tanh, matching the PyTorch reference).
    action = jnp.tanh(sample)
    t = jnp.tanh(action)
    log_prob = log_prob - jnp.log(1.0 - t * t + 1e-07)

    action_ref[...] = action
    logp_ref[...] = log_prob


def _vmem_spec():
    return pl.BlockSpec(memory_space=pltpu.MemorySpace.VMEM)


def prepare_params(params):
    """Zero-pad weights to lane-aligned shapes and cast matmul operands to bf16.

    Zero padding leaves the real output columns numerically unchanged
    (padded hidden units are exactly 0 after ReLU and multiply zero rows)."""
    s, h1 = params["w1"].shape
    h2 = params["w2"].shape[1]
    a = params["wmu"].shape[1]
    s_p, h1_p = _round_up(s, _LANE), _round_up(h1, _LANE)
    h2_p, a_p = _round_up(h2, _LANE), _round_up(a, _LANE)

    def pad2(arr, rows, cols, dtype):
        out = jnp.zeros((rows, cols), dtype)
        return out.at[:arr.shape[0], :arr.shape[1]].set(arr.astype(dtype))

    return {
        "w1": pad2(params["w1"], s_p, h1_p, jnp.bfloat16),
        "b1": pad2(params["b1"], 1, h1_p, jnp.float32),
        "w2": pad2(params["w2"], h1_p, h2_p, jnp.bfloat16),
        "b2": pad2(params["b2"], 1, h2_p, jnp.float32),
        "wmu": pad2(params["wmu"], h2_p, a_p, jnp.bfloat16),
        "bmu": pad2(params["bmu"], 1, a_p, jnp.float32),
        "wstd": pad2(params["wstd"], h2_p, a_p, jnp.bfloat16),
        "bstd": pad2(params["bstd"], 1, a_p, jnp.float32),
    }


@jax.jit
def actor_net_forward(x, prepared, eps):
    """x: [B, S] f32, eps: [B, A] f32, prepared: output of prepare_params."""
    B, S = x.shape
    A = eps.shape[1]
    S_pad = prepared["w1"].shape[0]
    A_pad = prepared["wmu"].shape[1]
    B_pad = _round_up(max(B, _SUBLANE), _SUBLANE)

    x_p = jnp.zeros((B_pad, S_pad), jnp.bfloat16).at[:B, :S].set(
        x.astype(jnp.bfloat16))
    eps_p = jnp.zeros((B_pad, A_pad), jnp.float32).at[:B, :A].set(eps)

    args = (
        x_p,
        prepared["w1"], prepared["b1"],
        prepared["w2"], prepared["b2"],
        prepared["wmu"], prepared["bmu"],
        prepared["wstd"], prepared["bstd"],
        eps_p,
    )

    action_p, logp_p = pl.pallas_call(
        actor_kernel,
        out_shape=(
            jax.ShapeDtypeStruct((B_pad, A_pad), jnp.float32),
            jax.ShapeDtypeStruct((B_pad, A_pad), jnp.float32),
        ),
        in_specs=[_vmem_spec() for _ in args],
        out_specs=(_vmem_spec(), _vmem_spec()),
    )(*args)

    return action_p[:B, :A], logp_p[:B, :A]


def init_params(key, state_dim, action_dim):
    """Mirror nn.Linear default init (uniform +/- 1/sqrt(fan_in)).
    Weights are stored as [in, out] so the kernel computes x @ W + b."""
    def linear(k, fan_in, fan_out):
        kw, kb = jax.random.split(k)
        bound = 1.0 / math.sqrt(fan_in)
        w = jax.random.uniform(kw, (fan_in, fan_out), jnp.float32, -bound, bound)
        b = jax.random.uniform(kb, (1, fan_out), jnp.float32, -bound, bound)
        return w, b

    k1, k2, k3, k4 = jax.random.split(key, 4)
    w1, b1 = linear(k1, state_dim, HIDDEN1_UNITS)
    w2, b2 = linear(k2, HIDDEN1_UNITS, HIDDEN2_UNITS)
    wmu, bmu = linear(k3, HIDDEN2_UNITS, action_dim)
    wstd, bstd = linear(k4, HIDDEN2_UNITS, action_dim)
    return {"w1": w1, "b1": b1, "w2": w2, "b2": b2,
            "wmu": wmu, "bmu": bmu, "wstd": wstd, "bstd": bstd}


if __name__ == "__main__":
    key = jax.random.PRNGKey(0)
    k_param, k_x, k_eps = jax.random.split(key, 3)

    B, STATE_DIM, ACTION_DIM = 8, 16, 4

    params = init_params(k_param, STATE_DIM, ACTION_DIM)
    prepared = prepare_params(params)
    x = jax.random.normal(k_x, (B, STATE_DIM), jnp.float32)
    # TODO(synk): rsample noise is generated outside the kernel (deterministic
    # PRNGKey) rather than with pltpu.prng_* inside; semantics are identical.
    eps = jax.random.normal(k_eps, (B, ACTION_DIM), jnp.float32)

    action, log_prob = actor_net_forward(x, prepared, eps)
    jax.block_until_ready((action, log_prob))

    # Pure-JAX reference using the same bf16-matmul / f32-elementwise recipe.
    def ref(x, p, eps):
        bf = jnp.bfloat16
        h1 = jnp.maximum(
            jnp.dot(x.astype(bf), p["w1"].astype(bf),
                    preferred_element_type=jnp.float32) + p["b1"], 0.0)
        h2 = jnp.maximum(
            jnp.dot(h1.astype(bf), p["w2"].astype(bf),
                    preferred_element_type=jnp.float32) + p["b2"], 0.0)
        mu = jnp.dot(h2.astype(bf), p["wmu"].astype(bf),
                     preferred_element_type=jnp.float32) + p["bmu"]
        std = jnp.logaddexp(
            jnp.dot(h2.astype(bf), p["wstd"].astype(bf),
                    preferred_element_type=jnp.float32) + p["bstd"], 0.0)
        sample = mu + std * eps
        lp = -0.5 * eps * eps - jnp.log(std) - _HALF_LOG_2PI
        a = jnp.tanh(sample)
        lp = lp - jnp.log(1.0 - jnp.tanh(a) ** 2 + 1e-07)
        return a, lp

    a_ref, lp_ref = ref(x, params, eps)
    assert jnp.allclose(action, a_ref, atol=2e-3, rtol=2e-3), "action mismatch"
    assert jnp.allclose(log_prob, lp_ref, atol=1e-2, rtol=1e-2), "log_prob mismatch"

    print("KERNEL_OK")
</pallas_src>

<mosaic_0001>
module attributes {stable_mosaic.version = 11 : i64} {
  func.func @actor_kernel(%arg0: memref<8x128xbf16, #tpu.memory_space<vmem>>, %arg1: memref<128x384xbf16, #tpu.memory_space<vmem>>, %arg2: memref<1x384xf32, #tpu.memory_space<vmem>>, %arg3: memref<384x640xbf16, #tpu.memory_space<vmem>>, %arg4: memref<1x640xf32, #tpu.memory_space<vmem>>, %arg5: memref<640x128xbf16, #tpu.memory_space<vmem>>, %arg6: memref<1x128xf32, #tpu.memory_space<vmem>>, %arg7: memref<640x128xbf16, #tpu.memory_space<vmem>>, %arg8: memref<1x128xf32, #tpu.memory_space<vmem>>, %arg9: memref<8x128xf32, #tpu.memory_space<vmem>>, %arg10: memref<8x128xf32, #tpu.memory_space<vmem>>, %arg11: memref<8x128xf32, #tpu.memory_space<vmem>>) attributes {dimension_semantics = [], scalar_prefetch = 0 : i64, scratch_operands = 0 : i64, tpu.core_type = #tpu.core_type<tc>} {
    %c0 = arith.constant 0 : index
    %c0_0 = arith.constant 0 : index
    %0 = vector.load %arg0[%c0, %c0_0] : memref<8x128xbf16, #tpu.memory_space<vmem>>, vector<8x128xbf16>
    %c0_1 = arith.constant 0 : index
    %c0_2 = arith.constant 0 : index
    %1 = vector.load %arg1[%c0_1, %c0_2] : memref<128x384xbf16, #tpu.memory_space<vmem>>, vector<128x384xbf16>
    %cst = arith.constant dense<0.000000e+00> : vector<8x384xf32>
    %2 = tpu.matmul %0, %1, %cst {dimension_numbers = #tpu.dot_dimension_numbers<[1], [0], [0], [1], [0, 0, 1, 1], [], []>} : vector<8x128xbf16>, vector<128x384xbf16>, vector<8x384xf32> -> vector<8x384xf32>
    %c0_3 = arith.constant 0 : index
    %c0_4 = arith.constant 0 : index
    %3 = vector.load %arg2[%c0_3, %c0_4] : memref<1x384xf32, #tpu.memory_space<vmem>>, vector<1x384xf32>
    %4 = vector.broadcast %3 : vector<1x384xf32> to vector<8x384xf32>
    %5 = arith.addf %2, %4 : vector<8x384xf32>
    %cst_5 = arith.constant 0.000000e+00 : f32
    %6 = vector.broadcast %cst_5 : f32 to vector<8x384xf32>
    %7 = arith.maximumf %5, %6 : vector<8x384xf32>
    %8 = arith.truncf %7 : vector<8x384xf32> to vector<8x384xbf16>
    %c0_6 = arith.constant 0 : index
    %c0_7 = arith.constant 0 : index
    %9 = vector.load %arg3[%c0_6, %c0_7] : memref<384x640xbf16, #tpu.memory_space<vmem>>, vector<384x640xbf16>
    %cst_8 = arith.constant dense<0.000000e+00> : vector<8x640xf32>
    %10 = tpu.matmul %8, %9, %cst_8 {dimension_numbers = #tpu.dot_dimension_numbers<[1], [0], [0], [1], [0, 0, 1, 1], [], []>} : vector<8x384xbf16>, vector<384x640xbf16>, vector<8x640xf32> -> vector<8x640xf32>
    %c0_9 = arith.constant 0 : index
    %c0_10 = arith.constant 0 : index
    %11 = vector.load %arg4[%c0_9, %c0_10] : memref<1x640xf32, #tpu.memory_space<vmem>>, vector<1x640xf32>
    %12 = vector.broadcast %11 : vector<1x640xf32> to vector<8x640xf32>
    %13 = arith.addf %10, %12 : vector<8x640xf32>
    %cst_11 = arith.constant 0.000000e+00 : f32
    %14 = vector.broadcast %cst_11 : f32 to vector<8x640xf32>
    %15 = arith.maximumf %13, %14 : vector<8x640xf32>
    %16 = arith.truncf %15 : vector<8x640xf32> to vector<8x640xbf16>
    %c0_12 = arith.constant 0 : index
    %c0_13 = arith.constant 0 : index
    %17 = vector.load %arg5[%c0_12, %c0_13] : memref<640x128xbf16, #tpu.memory_space<vmem>>, vector<640x128xbf16>
    %cst_14 = arith.constant dense<0.000000e+00> : vector<8x128xf32>
    %18 = tpu.matmul %16, %17, %cst_14 {dimension_numbers = #tpu.dot_dimension_numbers<[1], [0], [0], [1], [0, 0, 1, 1], [], []>} : vector<8x640xbf16>, vector<640x128xbf16>, vector<8x128xf32> -> vector<8x128xf32>
    %c0_15 = arith.constant 0 : index
    %c0_16 = arith.constant 0 : index
    %19 = vector.load %arg6[%c0_15, %c0_16] : memref<1x128xf32, #tpu.memory_space<vmem>>, vector<1x128xf32>
    %20 = vector.broadcast %19 : vector<1x128xf32> to vector<8x128xf32>
    %21 = arith.addf %18, %20 : vector<8x128xf32>
    %c0_17 = arith.constant 0 : index
    %c0_18 = arith.constant 0 : index
    %22 = vector.load %arg7[%c0_17, %c0_18] : memref<640x128xbf16, #tpu.memory_space<vmem>>, vector<640x128xbf16>
    %cst_19 = arith.constant dense<0.000000e+00> : vector<8x128xf32>
    %23 = tpu.matmul %16, %22, %cst_19 {dimension_numbers = #tpu.dot_dimension_numbers<[1], [0], [0], [1], [0, 0, 1, 1], [], []>} : vector<8x640xbf16>, vector<640x128xbf16>, vector<8x128xf32> -> vector<8x128xf32>
    %c0_20 = arith.constant 0 : index
    %c0_21 = arith.constant 0 : index
    %24 = vector.load %arg8[%c0_20, %c0_21] : memref<1x128xf32, #tpu.memory_space<vmem>>, vector<1x128xf32>
    %25 = vector.broadcast %24 : vector<1x128xf32> to vector<8x128xf32>
    %26 = arith.addf %23, %25 : vector<8x128xf32>
    %cst_22 = arith.constant 0.000000e+00 : f32
    %27 = vector.broadcast %cst_22 : f32 to vector<8x128xf32>
    %28 = arith.maximumf %26, %27 : vector<8x128xf32>
    %29 = vector.broadcast %cst_22 : f32 to vector<8x128xf32>
    %30 = arith.subf %26, %29 : vector<8x128xf32>
    %31 = arith.cmpf one, %30, %30 : vector<8x128xf32>
    %32 = vector.broadcast %cst_22 : f32 to vector<8x128xf32>
    %33 = arith.addf %26, %32 : vector<8x128xf32>
    %34 = math.absf %30 : vector<8x128xf32>
    %cst_23 = arith.constant 0.000000e+00 : f32
    %35 = vector.broadcast %cst_23 : f32 to vector<8x128xf32>
    %36 = arith.subf %35, %34 : vector<8x128xf32>
    %37 = math.exp %36 : vector<8x128xf32>
    %38 = math.log1p %37 : vector<8x128xf32>
    %39 = arith.addf %28, %38 : vector<8x128xf32>
    %40 = arith.select %31, %33, %39 : vector<8x128xi1>, vector<8x128xf32>
    %c0_24 = arith.constant 0 : index
    %c0_25 = arith.constant 0 : index
    %41 = vector.load %arg9[%c0_24, %c0_25] : memref<8x128xf32, #tpu.memory_space<vmem>>, vector<8x128xf32>
    %42 = arith.mulf %40, %41 : vector<8x128xf32>
    %43 = arith.addf %21, %42 : vector<8x128xf32>
    %cst_26 = arith.constant -5.000000e-01 : f32
    %44 = vector.broadcast %cst_26 : f32 to vector<8x128xf32>
    %45 = arith.mulf %44, %41 : vector<8x128xf32>
    %46 = arith.mulf %45, %41 : vector<8x128xf32>
    %47 = math.log %40 : vector<8x128xf32>
    %48 = arith.subf %46, %47 : vector<8x128xf32>
    %cst_27 = arith.constant 0.918938517 : f32
    %49 = vector.broadcast %cst_27 : f32 to vector<8x128xf32>
    %50 = arith.subf %48, %49 : vector<8x128xf32>
    %51 = math.tanh %43 : vector<8x128xf32>
    %52 = math.tanh %51 : vector<8x128xf32>
    %53 = arith.mulf %52, %52 : vector<8x128xf32>
    %cst_28 = arith.constant 1.000000e+00 : f32
    %54 = vector.broadcast %cst_28 : f32 to vector<8x128xf32>
    %55 = arith.subf %54, %53 : vector<8x128xf32>
    %cst_29 = arith.constant 1.000000e-07 : f32
    %56 = vector.broadcast %cst_29 : f32 to vector<8x128xf32>
    %57 = arith.addf %55, %56 : vector<8x128xf32>
    %58 = math.log %57 : vector<8x128xf32>
    %59 = arith.subf %50, %58 : vector<8x128xf32>
    %c0_30 = arith.constant 0 : index
    %c0_31 = arith.constant 0 : index
    %60 = vector.load %arg10[%c0_30, %c0_31] : memref<8x128xf32, #tpu.memory_space<vmem>>, vector<8x128xf32>
    tpu.vector_store %arg10[%c0_30, %c0_31], %51 {strides = array<i32>} : memref<8x128xf32, #tpu.memory_space<vmem>>, vector<8x128xf32>,
    %c0_32 = arith.constant 0 : index
    %c0_33 = arith.constant 0 : index
    %61 = vector.load %arg11[%c0_32, %c0_33] : memref<8x128xf32, #tpu.memory_space<vmem>>, vector<8x128xf32>
    tpu.vector_store %arg11[%c0_32, %c0_33], %59 {strides = array<i32>} : memref<8x128xf32, #tpu.memory_space<vmem>>, vector<8x128xf32>,
    return
  }
}

</mosaic_0001>

<llo_original>
// kernel: actor_net_forward.1
$region0: #{actor_net_forward.1}
  #allocation0 [shape = 'u32[]', space=smem, size = 0x4, offset = 0x4, fixed_abs, tag = 'smem constant byte address 0x4 - core index']
  #allocation1 [shape = 'u32[144,128]{1,0:T(1,128)}', space=vmem, size = 0x12000, scoped, tag = 'internal scratch']
  %s0 = inlined_call_operand.vmem [shape: bf16[8,128], index: 0, kind: input, shape index: {}]
  %s1 = inlined_call_operand.hbm [shape: bf16[128,384], index: 1, kind: input, shape index: {}]
  %s2 = inlined_call_operand.vmem [shape: f32[1,384], index: 2, kind: input, shape index: {}]
  %s3 = inlined_call_operand.hbm [shape: bf16[384,640], index: 3, kind: input, shape index: {}]
  %s4 = inlined_call_operand.vmem [shape: f32[1,640], index: 4, kind: input, shape index: {}]
  %s5 = inlined_call_operand.hbm [shape: bf16[640,128], index: 5, kind: input, shape index: {}]
  %s6 = inlined_call_operand.vmem [shape: f32[1,128], index: 6, kind: input, shape index: {}]
  %s7 = inlined_call_operand.hbm [shape: bf16[640,128], index: 7, kind: input, shape index: {}]
  %s8 = inlined_call_operand.vmem [shape: f32[1,128], index: 8, kind: input, shape index: {}]
  %s9 = inlined_call_operand.vmem [shape: f32[8,128], index: 9, kind: input, shape index: {}]
  %s10 = inlined_call_operand.vmem [shape: f32[8,128], index: 10, kind: output, shape index: {0}]
  %s11 = inlined_call_operand.vmem [shape: f32[8,128], index: 11, kind: output, shape index: {1}]
  %12 = xla_tuple %s10, %s11
  %s13 = sld [smem:[#allocation0]]
  $region74: #{actor_net_forward.1} parent=0
    _
  %s15 = ssub.s32 1, %s13
  %s16 = scalar_select 0, %s15, %s13
  $region1: #{actor_net_forward.1} parent=0
    #allocation2 [shape = 'u8[98304]{0}', space=vmem, size = 0x18000, scoped, tag = 'input window, operand 1, single buffered']
    #allocation3 [shape = 's32[1]{0}', space=sflag, size = 0x4, scoped, tag = 'scoped memory for actor_net_forward.1']
    #allocation4 [shape = 'u8[491520]{0}', space=vmem, size = 0x78000, scoped, tag = 'input window, operand 3, single buffered']
    #allocation5 [shape = 's32[1]{0}', space=sflag, size = 0x4, scoped, tag = 'scoped memory for actor_net_forward.1']
    #allocation6 [shape = 'u8[163840]{0}', space=vmem, size = 0x28000, scoped, tag = 'input window, operand 5, single buffered']
    #allocation7 [shape = 'u8[163840]{0}', space=vmem, size = 0x28000, scoped, tag = 'input window, operand 7, single buffered']
    #allocation8 [shape = 's32[1]{0}', space=sflag, size = 0x4, scoped, tag = 'scoped memory for actor_net_forward.1']
    %17 = vsyncpa [#allocation3], 0
    %18 = vsyncpa [#allocation5], 0
    %19 = vsyncpa [#allocation8], 0
    // Predicated region
    $region2: #{actor_net_forward.1} parent=1 // pred_check
      _
    $region3: #{actor_net_forward.1} parent=1 // pred_check_branch
      %21 = sbr.rel (0) target = $region5
    $region4: #{actor_net_forward.1} parent=1 // pred_region
      _
    $region5: #{actor_net_forward.1} parent=1 // pred_fallthru
      _
    // Predicated region
    $region6: #{actor_net_forward.1} parent=1 // pred_check
      _
    $region7: #{actor_net_forward.1} parent=1 // pred_check_branch
      %23 = sbr.rel (0) target = $region9
    $region8: #{actor_net_forward.1} parent=1 // pred_region
      %s25 = ssub.s32 3072, 3072
      %26 = vsyncadd [#allocation3], %s25
      %s27 = sshll.u32 [#allocation2], 4
      %s28 = int_to_ptr.vmem [resolvable:$true] %s27
      %33 = dma.hbm_to_vmem [thread:$0]  %s1, 3072, %s28, [#allocation3], 192, 192, 12
    $region9: #{actor_net_forward.1} parent=1 // pred_fallthru
      _
    // Predicated region
    $region10: #{actor_net_forward.1} parent=1 // pred_check
      _
    $region11: #{actor_net_forward.1} parent=1 // pred_check_branch
      %35 = sbr.rel (0) target = $region13
    $region12: #{actor_net_forward.1} parent=1 // pred_region
      _
    $region13: #{actor_net_forward.1} parent=1 // pred_fallthru
      _
    // Predicated region
    $region14: #{actor_net_forward.1} parent=1 // pred_check
      _
    $region15: #{actor_net_forward.1} parent=1 // pred_check_branch
      %37 = sbr.rel (0) target = $region17
    $region16: #{actor_net_forward.1} parent=1 // pred_region
      %s39 = ssub.s32 15360, 15360
      %40 = vsyncadd [#allocation5], %s39
      %s41 = sshll.u32 [#allocation4], 4
      %s42 = int_to_ptr.vmem [resolvable:$true] %s41
      %47 = dma.hbm_to_vmem [thread:$0]  %s3, 15360, %s42, [#allocation5], 320, 320, 20
    $region17: #{actor_net_forward.1} parent=1 // pred_fallthru
      _
    // Predicated region
    $region18: #{actor_net_forward.1} parent=1 // pred_check
      _
    $region19: #{actor_net_forward.1} parent=1 // pred_check_branch
      %49 = sbr.rel (0) target = $region21
    $region20: #{actor_net_forward.1} parent=1 // pred_region
      _
    $region21: #{actor_net_forward.1} parent=1 // pred_fallthru
      _
    // Predicated region
    $region22: #{actor_net_forward.1} parent=1 // pred_check
      _
    $region23: #{actor_net_forward.1} parent=1 // pred_check_branch
      %51 = sbr.rel (0) target = $region25
    $region24: #{actor_net_forward.1} parent=1 // pred_region
      %s53 = ssub.s32 5120, 5120
      %54 = vsyncadd [#allocation5], %s53
      %s55 = sshll.u32 [#allocation6], 4
      %s56 = int_to_ptr.vmem [resolvable:$true] %s55
      %61 = dma.hbm_to_vmem [thread:$0]  %s5, 5120, %s56, [#allocation5], 64, 64, 4
    $region25: #{actor_net_forward.1} parent=1 // pred_fallthru
      _
    // Predicated region
    $region26: #{actor_net_forward.1} parent=1 // pred_check
      _
    $region27: #{actor_net_forward.1} parent=1 // pred_check_branch
      %63 = sbr.rel (0) target = $region29
    $region28: #{actor_net_forward.1} parent=1 // pred_region
      _
    $region29: #{actor_net_forward.1} parent=1 // pred_fallthru
      _
    // Predicated region
    $region30: #{actor_net_forward.1} parent=1 // pred_check
      _
    $region31: #{actor_net_forward.1} parent=1 // pred_check_branch
      %65 = sbr.rel (0) target = $region33
    $region32: #{actor_net_forward.1} parent=1 // pred_region
      %s67 = ssub.s32 5120, 5120
      %68 = vsyncadd [#allocation8], %s67
      %s69 = sshll.u32 [#allocation7], 4
      %s70 = int_to_ptr.vmem [resolvable:$true] %s69
      %75 = dma.hbm_to_vmem [thread:$0]  %s7, 5120, %s70, [#allocation8], 64, 64, 4
    $region33: #{actor_net_forward.1} parent=1 // pred_fallthru
      _
    // Predicated region
    $region34: #{actor_net_forward.1} parent=1 // pred_check
      _
    $region35: #{actor_net_forward.1} parent=1 // pred_check_branch
      %77 = sbr.rel (0) target = $region37
    $region36: #{actor_net_forward.1} parent=1 // pred_region
      _
    $region37: #{actor_net_forward.1} parent=1 // pred_fallthru
      _
    // Predicated region
    $region38: #{actor_net_forward.1} parent=1 // pred_check
      _
    $region39: #{actor_net_forward.1} parent=1 // pred_check_branch
      %79 = sbr.rel (0) target = $region41
    $region40: #{actor_net_forward.1} parent=1 // pred_region
      _
    $region41: #{actor_net_forward.1} parent=1 // pred_fallthru
      _
    // Predicated region
    $region42: #{actor_net_forward.1} parent=1 // pred_check
      _
    $region43: #{actor_net_forward.1} parent=1 // pred_check_branch
      %81 = sbr.rel (0) target = $region45
    $region44: #{actor_net_forward.1} parent=1 // pred_region
      %82 = dma.done [#allocation3], 3072
    $region45: #{actor_net_forward.1} parent=1 // pred_fallthru
      _
    // Predicated region
    $region46: #{actor_net_forward.1} parent=1 // pred_check
      _
    $region47: #{actor_net_forward.1} parent=1 // pred_check_branch
      %84 = sbr.rel (0) target = $region49
    $region48: #{actor_net_forward.1} parent=1 // pred_region
      %85 = dma.done [#allocation5], 15360
    $region49: #{actor_net_forward.1} parent=1 // pred_fallthru
      _
    // Predicated region
    $region50: #{actor_net_forward.1} parent=1 // pred_check
      _
    $region51: #{actor_net_forward.1} parent=1 // pred_check_branch
      %87 = sbr.rel (0) target = $region53
    $region52: #{actor_net_forward.1} parent=1 // pred_region
      %88 = dma.done [#allocation5], 5120
    $region53: #{actor_net_forward.1} parent=1 // pred_fallthru
      _
    // Predicated region
    $region54: #{actor_net_forward.1} parent=1 // pred_check
      _
    $region55: #{actor_net_forward.1} parent=1 // pred_check_branch
      %90 = sbr.rel (0) target = $region57
    $region56: #{actor_net_forward.1} parent=1 // pred_region
      %91 = dma.done [#allocation8], 5120
    $region57: #{actor_net_forward.1} parent=1 // pred_fallthru
      _
    %v93 = vld [vmem:[%s0] sm:$0xf]
    %v94 = vld [vmem:[#allocation2] sm:$0xff]
    %v95 = vld [vmem:[#allocation2 + $0x8] sm:$0xf]
    %v96 = vld [vmem:[#allocation2 + $0xc] sm:$0xff]
    %v97 = vld [vmem:[#allocation2 + $0x14] sm:$0xf]
    %v98 = vld [vmem:[#allocation2 + $0x18] sm:$0xff]
    %v99 = vld [vmem:[#allocation2 + $0x20] sm:$0xf]
    %v100 = vld [vmem:[#allocation2 + $0x24] sm:$0xff]
    %v101 = vld [vmem:[#allocation2 + $0x2c] sm:$0xf]
    %v102 = vld [vmem:[#allocation2 + $0x30] sm:$0xff]
    %v103 = vld [vmem:[#allocation2 + $0x38] sm:$0xf]
    %v104 = vld [vmem:[#allocation2 + $0x3c] sm:$0xff]
    %v105 = vld [vmem:[#allocation2 + $0x44] sm:$0xf]
    %v106 = vld [vmem:[#allocation2 + $0x48] sm:$0xff]
    %v107 = vld [vmem:[#allocation2 + $0x50] sm:$0xf]
    %v108 = vld [vmem:[#allocation2 + $0x54] sm:$0xff]
    %v109 = vld [vmem:[#allocation2 + $0x5c] sm:$0xf]
    %v110 = vld [vmem:[#allocation2 + $0x60] sm:$0xff]
    %v111 = vld [vmem:[#allocation2 + $0x68] sm:$0xf]
    %v112 = vld [vmem:[#allocation2 + $0x6c] sm:$0xff]
    %v113 = vld [vmem:[#allocation2 + $0x74] sm:$0xf]
    %v114 = vld [vmem:[#allocation2 + $0x78] sm:$0xff]
    %v115 = vld [vmem:[#allocation2 + $0x80] sm:$0xf]
    %v116 = vld [vmem:[#allocation2 + $0x84] sm:$0xff]
    %v117 = vld [vmem:[#allocation2 + $0x8c] sm:$0xf]
    %v118 = vld [vmem:[#allocation2 + $0x90] sm:$0xff]
    %v119 = vld [vmem:[#allocation2 + $0x98] sm:$0xf]
    %v120 = vld [vmem:[#allocation2 + $0x9c] sm:$0xff]
    %v121 = vld [vmem:[#allocation2 + $0xa4] sm:$0xf]
    %v122 = vld [vmem:[#allocation2 + $0xa8] sm:$0xff]
    %v123 = vld [vmem:[#allocation2 + $0xb0] sm:$0xf]
    %v124 = vld [vmem:[#allocation2 + $0xb4] sm:$0xff]
    %v125 = vld [vmem:[#allocation2 + $0xbc] sm:$0xf]
    %v126 = vld [vmem:[%s2] sm:$0x7]
    %v128 = vlaneseq
    %v129 = vshrl.u32 %v128, 7
    %v130 = vsub.s32 0, %v129
    %v131 = vrot.slane %v126, %v130
    %v132 = vlaneseq
    %v133 = vshrl.u32 %v132, 7
    %v134 = vsub.s32 1, %v133
    %v135 = vrot.slane %v126, %v134
    %v136 = vlaneseq
    %v137 = vshrl.u32 %v136, 7
    %v138 = vsub.s32 2, %v137
    %v139 = vrot.slane %v126, %v138
    %v175 = vunpack.c.l.b16 %v94
    %v176 = vunpack.c.h.b16 %v94
    %v177 = vunpack.c.l.b16 %v95
    %v178 = vunpack.c.l.b16 %v96
    %v179 = vunpack.c.h.b16 %v96
    %v180 = vunpack.c.l.b16 %v97
    %v181 = vunpack.c.l.b16 %v98
    %v182 = vunpack.c.h.b16 %v98
    %v183 = vunpack.c.l.b16 %v99
    %v184 = vunpack.c.l.b16 %v100
    %v185 = vunpack.c.h.b16 %v100
    %v186 = vunpack.c.l.b16 %v101
    %v187 = vunpack.c.l.b16 %v102
    %v188 = vunpack.c.h.b16 %v102
    %v189 = vunpack.c.l.b16 %v103
    %v190 = vunpack.c.l.b16 %v104
    %v191 = vunpack.c.h.b16 %v104
    %v192 = vunpack.c.l.b16 %v105
    %v193 = vunpack.c.l.b16 %v106
    %v194 = vunpack.c.h.b16 %v106
    %v195 = vunpack.c.l.b16 %v107
    %v196 = vunpack.c.l.b16 %v108
    %v197 = vunpack.c.h.b16 %v108
    %v198 = vunpack.c.l.b16 %v109
    %v199 = vunpack.c.l.b16 %v110
    %v200 = vunpack.c.h.b16 %v110
    %v201 = vunpack.c.l.b16 %v111
    %v202 = vunpack.c.l.b16 %v112
    %v203 = vunpack.c.h.b16 %v112
    %v204 = vunpack.c.l.b16 %v113
    %v205 = vunpack.c.l.b16 %v114
    %v206 = vunpack.c.h.b16 %v114
    %v207 = vunpack.c.l.b16 %v115
    %v208 = vunpack.c.l.b16 %v116
    %v209 = vunpack.c.h.b16 %v116
    %v210 = vunpack.c.l.b16 %v117
    %v211 = vunpack.c.l.b16 %v118
    %v212 = vunpack.c.h.b16 %v118
    %v213 = vunpack.c.l.b16 %v119
    %v214 = vunpack.c.l.b16 %v120
    %v215 = vunpack.c.h.b16 %v120
    %v216 = vunpack.c.l.b16 %v121
    %v217 = vunpack.c.l.b16 %v122
    %v218 = vunpack.c.h.b16 %v122
    %v219 = vunpack.c.l.b16 %v123
    %v220 = vunpack.c.l.b16 %v124
    %v221 = vunpack.c.h.b16 %v124
    %v222 = vunpack.c.l.b16 %v125
    %v223 = vpack.c.b16 %v178, %v175
    %v224 = vpack.c.b16 %v179, %v176
    %v225 = vpack.c.b16 %v180, %v177
    %v226 = vpack.c.b16 %v184, %v181
    %v227 = vpack.c.b16 %v185, %v182
    %v228 = vpack.c.b16 %v186, %v183
    %v229 = vpack.c.b16 %v190, %v187
    %v230 = vpack.c.b16 %v191, %v188
    %v231 = vpack.c.b16 %v192, %v189
    %v232 = vpack.c.b16 %v196, %v193
    %v233 = vpack.c.b16 %v197, %v194
    %v234 = vpack.c.b16 %v198, %v195
    %v235 = vpack.c.b16 %v202, %v199
    %v236 = vpack.c.b16 %v203, %v200
    %v237 = vpack.c.b16 %v204, %v201
    %v238 = vpack.c.b16 %v208, %v205
    %v239 = vpack.c.b16 %v209, %v206
    %v240 = vpack.c.b16 %v210, %v207
    %v241 = vpack.c.b16 %v214, %v211
    %v242 = vpack.c.b16 %v215, %v212
    %v243 = vpack.c.b16 %v216, %v213
    %v244 = vpack.c.b16 %v220, %v217
    %v245 = vpack.c.b16 %v221, %v218
    %v246 = vpack.c.b16 %v222, %v219
    %271 = vmatprep.subr.bf16.mxu0 %v245
    %272 = vmatpush1.bf16.msra.mxu0 %v244
    %273 = vmatprep.subr.bf16.mxu0 %v242
    %274 = vmatpush1.bf16.msra.mxu0 %v241
    %275 = vmatprep.subr.bf16.mxu0 %v239
    %276 = vmatpush1.bf16.msra.mxu0 %v238
    %277 = vmatprep.subr.bf16.mxu0 %v236
    %278 = vmatpush1.bf16.msra.mxu0 %v235
    %279 = vmatprep.subr.bf16.mxu0 %v233
    %280 = vmatpush1.bf16.msra.mxu0 %v232
    %281 = vmatprep.subr.bf16.mxu0 %v230
    %282 = vmatpush1.bf16.msra.mxu0 %v229
    %283 = vmatprep.subr.bf16.mxu0 %v227
    %284 = vmatpush1.bf16.msra.mxu0 %v226
    %285 = vmatprep.subr.bf16.mxu0 %v224
    %286 = vmatpush1.bf16.msra.mxu0 %v223
    %287 = vmatprep.subr.bf16.mxu0 0
    %288 = vmatpush2.bf16.msra.mxu0 0
    %289 = vmatprep.subr.bf16.mxu0 0
    %290 = vmatpush2.bf16.msra.mxu0 0
    %291 = vmatprep.subr.bf16.mxu0 0
    %292 = vmatpush2.bf16.msra.mxu0 0
    %293 = vmatprep.subr.bf16.mxu0 0
    %294 = vmatpush2.bf16.msra.mxu0 0
    %295 = vmatprep.subr.bf16.mxu0 0
    %296 = vmatpush2.bf16.msra.mxu0 0
    %297 = vmatprep.subr.bf16.mxu0 0
    %298 = vmatpush2.bf16.msra.mxu0 0
    %299 = vmatprep.subr.bf16.mxu0 0
    %300 = vmatpush2.bf16.msra.mxu0 0
    %301 = vmatprep.subr.bf16.mxu0 0
    %302 = vmatpush2.bf16.msra.mxu0 0
    %303 = vmatprep.mubr.bf16.mxu0 0
    %304 = vmatmul.mubr.bf16.gmra.mxu0 %v93
    %v305 = vpop.f32.mrf.mxu0
    %v306 = vadd.f32 %v131, %v305
    %v307 = vpop.f32.mrf.mxu0
    %v308 = vadd.f32 %v135, %v307
    %v309 = vpop.f32.mrf.mxu0
    %v310 = vpop.f32.mrf.mxu0
    %311 = vdwg.mxu0
    %312 = vmatprep.subr.bf16.mxu0 0
    %313 = vmatpush1.bf16.msra.mxu0 %v246
    %314 = vmatprep.subr.bf16.mxu0 0
    %315 = vmatpush1.bf16.msra.mxu0 %v243
    %316 = vmatprep.subr.bf16.mxu0 0
    %317 = vmatpush1.bf16.msra.mxu0 %v240
    %318 = vmatprep.subr.bf16.mxu0 0
    %319 = vmatpush1.bf16.msra.mxu0 %v237
    %320 = vmatprep.subr.bf16.mxu0 0
    %321 = vmatpush1.bf16.msra.mxu0 %v234
    %322 = vmatprep.subr.bf16.mxu0 0
    %323 = vmatpush1.bf16.msra.mxu0 %v231
    %324 = vmatprep.subr.bf16.mxu0 0
    %325 = vmatpush1.bf16.msra.mxu0 %v228
    %326 = vmatprep.subr.bf16.mxu0 0
    %327 = vmatpush1.bf16.msra.mxu0 %v225
    %328 = vmatprep.subr.bf16.mxu0 0
    %329 = vmatpush2.bf16.msra.mxu0 0
    %330 = vmatprep.subr.bf16.mxu0 0
    %331 = vmatpush2.bf16.msra.mxu0 0
    %332 = vmatprep.subr.bf16.mxu0 0
    %333 = vmatpush2.bf16.msra.mxu0 0
    %334 = vmatprep.subr.bf16.mxu0 0
    %335 = vmatpush2.bf16.msra.mxu0 0
    %336 = vmatprep.subr.bf16.mxu0 0
    %337 = vmatpush2.bf16.msra.mxu0 0
    %338 = vmatprep.subr.bf16.mxu0 0
    %339 = vmatpush2.bf16.msra.mxu0 0
    %340 = vmatprep.subr.bf16.mxu0 0
    %341 = vmatpush2.bf16.msra.mxu0 0
    %342 = vmatprep.subr.bf16.mxu0 0
    %343 = vmatpush2.bf16.msra.mxu0 0
    %344 = vmatprep.mubr.bf16.mxu0 0
    %345 = vmatmul.mubr.bf16.gmra.mxu0 %v93
    %v346 = vpop.f32.mrf.mxu0
    %v347 = vadd.f32 %v139, %v346
    %v348 = vpop.f32.mrf.mxu0
    %v349 = vpop.f32.mrf.mxu0
    %v350 = vpop.f32.mrf.mxu0
    %351 = vdwg.mxu0
    %v352 = vmax.f32 %v306, 0.0
    %v353 = vmax.f32 %v308, 0.0
    %v354 = vmax.f32 %v347, 0.0
    %v355 = vpack.c.bf16 %v352, %v352
    %v356 = vpack.c.bf16 %v353, %v353
    %v357 = vpack.c.bf16 %v354, %v354
    %v358 = vld [vmem:[#allocation4] sm:$0xff]
    %v359 = vld [vmem:[#allocation4 + $0x8] sm:$0xff]
    %v360 = vld [vmem:[#allocation4 + $0x10] sm:$0xf]
    %v361 = vld [vmem:[#allocation4 + $0x14] sm:$0xff]
    %v362 = vld [vmem:[#allocation4 + $0x1c] sm:$0xff]
    %v363 = vld [vmem:[#allocation4 + $0x24] sm:$0xf]
    %v364 = vld [vmem:[#allocation4 + $0x28] sm:$0xff]
    %v365 = vld [vmem:[#allocation4 + $0x30] sm:$0xff]
    %v366 = vld [vmem:[#allocation4 + $0x38] sm:$0xf]
    %v367 = vld [vmem:[#allocation4 + $0x3c] sm:$0xff]
    %v368 = vld [vmem:[#allocation4 + $0x44] sm:$0xff]
    %v369 = vld [vmem:[#allocation4 + $0x4c] sm:$0xf]
    %v370 = vld [vmem:[#allocation4 + $0x50] sm:$0xff]
    %v371 = vld [vmem:[#allocation4 + $0x58] sm:$0xff]
    %v372 = vld [vmem:[#allocation4 + $0x60] sm:$0xf]
    %v373 = vld [vmem:[#allocation4 + $0x64] sm:$0xff]
    %v374 = vld [vmem:[#allocation4 + $0x6c] sm:$0xff]
    %v375 = vld [vmem:[#allocation4 + $0x74] sm:$0xf]
    %v376 = vld [vmem:[#allocation4 + $0x78] sm:$0xff]
    %v377 = vld [vmem:[#allocation4 + $0x80] sm:$0xff]
    %v378 = vld [vmem:[#allocation4 + $0x88] sm:$0xf]
    %v379 = vld [vmem:[#allocation4 + $0x8c] sm:$0xff]
    %v380 = vld [vmem:[#allocation4 + $0x94] sm:$0xff]
    %v381 = vld [vmem:[#allocation4 + $0x9c] sm:$0xf]
    %v382 = vld [vmem:[#allocation4 + $0xa0] sm:$0xff]
    %v383 = vld [vmem:[#allocation4 + $0xa8] sm:$0xff]
    %v384 = vld [vmem:[#allocation4 + $0xb0] sm:$0xf]
    %v385 = vld [vmem:[#allocation4 + $0xb4] sm:$0xff]
    %v386 = vld [vmem:[#allocation4 + $0xbc] sm:$0xff]
    %v387 = vld [vmem:[#allocation4 + $0xc4] sm:$0xf]
    %v388 = vld [vmem:[#allocation4 + $0xc8] sm:$0xff]
    %v389 = vld [vmem:[#allocation4 + $0xd0] sm:$0xff]
    %v390 = vld [vmem:[#allocation4 + $0xd8] sm:$0xf]
    %v391 = vld [vmem:[#allocation4 + $0xdc] sm:$0xff]
    %v392 = vld [vmem:[#allocation4 + $0xe4] sm:$0xff]
    %v393 = vld [vmem:[#allocation4 + $0xec] sm:$0xf]
    %v394 = vld [vmem:[#allocation4 + $0xf0] sm:$0xff]
    %v395 = vld [vmem:[#allocation4 + $0xf8] sm:$0xff]
    %v396 = vld [vmem:[#allocation4 + $0x100] sm:$0xf]
    %v397 = vld [vmem:[#allocation4 + $0x104] sm:$0xff]
    %v398 = vld [vmem:[#allocation4 + $0x10c] sm:$0xff]
    %v399 = vld [vmem:[#allocation4 + $0x114] sm:$0xf]
    %v400 = vld [vmem:[#allocation4 + $0x118] sm:$0xff]
    %v401 = vld [vmem:[#allocation4 + $0x120] sm:$0xff]
    %v402 = vld [vmem:[#allocation4 + $0x128] sm:$0xf]
    %v403 = vld [vmem:[#allocation4 + $0x12c] sm:$0xff]
    %v404 = vld [vmem:[#allocation4 + $0x134] sm:$0xff]
    %v405 = vld [vmem:[#allocation4 + $0x13c] sm:$0xf]
    %v406 = vld [vmem:[#allocation4 + $0x140] sm:$0xff]
    %v407 = vld [vmem:[#allocation4 + $0x148] sm:$0xff]
    %v408 = vld [vmem:[#allocation4 + $0x150] sm:$0xf]
    %v409 = vld [vmem:[#allocation4 + $0x154] sm:$0xff]
    %v410 = vld [vmem:[#allocation4 + $0x15c] sm:$0xff]
    %v411 = vld [vmem:[#allocation4 + $0x164] sm:$0xf]
    %v412 = vld [vmem:[#allocation4 + $0x168] sm:$0xff]
    %v413 = vld [vmem:[#allocation4 + $0x170] sm:$0xff]
    %v414 = vld [vmem:[#allocation4 + $0x178] sm:$0xf]
    %v415 = vld [vmem:[#allocation4 + $0x17c] sm:$0xff]
    %v416 = vld [vmem:[#allocation4 + $0x184] sm:$0xff]
    %v417 = vld [vmem:[#allocation4 + $0x18c] sm:$0xf]
    %v418 = vld [vmem:[#allocation4 + $0x190] sm:$0xff]
    %v419 = vld [vmem:[#allocation4 + $0x198] sm:$0xff]
    %v420 = vld [vmem:[#allocation4 + $0x1a0] sm:$0xf]
    %v421 = vld [vmem:[#allocation4 + $0x1a4] sm:$0xff]
    %v422 = vld [vmem:[#allocation4 + $0x1ac] sm:$0xff]
    %v423 = vld [vmem:[#allocation4 + $0x1b4] sm:$0xf]
    %v424 = vld [vmem:[#allocation4 + $0x1b8] sm:$0xff]
    %v425 = vld [vmem:[#allocation4 + $0x1c0] sm:$0xff]
    %v426 = vld [vmem:[#allocation4 + $0x1c8] sm:$0xf]
    %v427 = vld [vmem:[#allocation4 + $0x1cc] sm:$0xff]
    %v428 = vld [vmem:[#allocation4 + $0x1d4] sm:$0xff]
    %v429 = vld [vmem:[#allocation4 + $0x1dc] sm:$0xf]
    %v430 = vld [vmem:[#allocation4 + $0x1e0] sm:$0xff]
    %v431 = vld [vmem:[#allocation4 + $0x1e8] sm:$0xff]
    %v432 = vld [vmem:[#allocation4 + $0x1f0] sm:$0xf]
    %v433 = vld [vmem:[#allocation4 + $0x1f4] sm:$0xff]
    %v434 = vld [vmem:[#allocation4 + $0x1fc] sm:$0xff]
    %v435 = vld [vmem:[#allocation4 + $0x204] sm:$0xf]
    %v436 = vld [vmem:[#allocation4 + $0x208] sm:$0xff]
    %v437 = vld [vmem:[#allocation4 + $0x210] sm:$0xff]
    %v438 = vld [vmem:[#allocation4 + $0x218] sm:$0xf]
    %v439 = vld [vmem:[#allocation4 + $0x21c] sm:$0xff]
    %v440 = vld [vmem:[#allocation4 + $0x224] sm:$0xff]
    %v441 = vld [vmem:[#allocation4 + $0x22c] sm:$0xf]
    %v442 = vld [vmem:[#allocation4 + $0x230] sm:$0xff]
    %v443 = vld [vmem:[#allocation4 + $0x238] sm:$0xff]
    %v444 = vld [vmem:[#allocation4 + $0x240] sm:$0xf]
    %v445 = vld [vmem:[#allocation4 + $0x244] sm:$0xff]
    %v446 = vld [vmem:[#allocation4 + $0x24c] sm:$0xff]
    %v447 = vld [vmem:[#allocation4 + $0x254] sm:$0xf]
    %v448 = vld [vmem:[#allocation4 + $0x258] sm:$0xff]
    %v449 = vld [vmem:[#allocation4 + $0x260] sm:$0xff]
    %v450 = vld [vmem:[#allocation4 + $0x268] sm:$0xf]
    %v451 = vld [vmem:[#allocation4 + $0x26c] sm:$0xff]
    %v452 = vld [vmem:[#allocation4 + $0x274] sm:$0xff]
    %v453 = vld [vmem:[#allocation4 + $0x27c] sm:$0xf]
    %v454 = vld [vmem:[#allocation4 + $0x280] sm:$0xff]
    %v455 = vld [vmem:[#allocation4 + $0x288] sm:$0xff]
    %v456 = vld [vmem:[#allocation4 + $0x290] sm:$0xf]
    %v457 = vld [vmem:[#allocation4 + $0x294] sm:$0xff]
    %v458 = vld [vmem:[#allocation4 + $0x29c] sm:$0xff]
    %v459 = vld [vmem:[#allocation4 + $0x2a4] sm:$0xf]
    %v460 = vld [vmem:[#allocation4 + $0x2a8] sm:$0xff]
    %v461 = vld [vmem:[#allocation4 + $0x2b0] sm:$0xff]
    %v462 = vld [vmem:[#allocation4 + $0x2b8] sm:$0xf]
    %v463 = vld [vmem:[#allocation4 + $0x2bc] sm:$0xff]
    %v464 = vld [vmem:[#allocation4 + $0x2c4] sm:$0xff]
    %v465 = vld [vmem:[#allocation4 + $0x2cc] sm:$0xf]
    %v466 = vld [vmem:[#allocation4 + $0x2d0] sm:$0xff]
    %v467 = vld [vmem:[#allocation4 + $0x2d8] sm:$0xff]
    %v468 = vld [vmem:[#allocation4 + $0x2e0] sm:$0xf]
    %v469 = vld [vmem:[#allocation4 + $0x2e4] sm:$0xff]
    %v470 = vld [vmem:[#allocation4 + $0x2ec] sm:$0xff]
    %v471 = vld [vmem:[#allocation4 + $0x2f4] sm:$0xf]
    %v472 = vld [vmem:[#allocation4 + $0x2f8] sm:$0xff]
    %v473 = vld [vmem:[#allocation4 + $0x300] sm:$0xff]
    %v474 = vld [vmem:[#allocation4 + $0x308] sm:$0xf]
    %v475 = vld [vmem:[#allocation4 + $0x30c] sm:$0xff]
    %v476 = vld [vmem:[#allocation4 + $0x314] sm:$0xff]
    %v477 = vld [vmem:[#allocation4 + $0x31c] sm:$0xf]
    %v478 = vld [vmem:[#allocation4 + $0x320] sm:$0xff]
    %v479 = vld [vmem:[#allocation4 + $0x328] sm:$0xff]
    %v480 = vld [vmem:[#allocation4 + $0x330] sm:$0xf]
    %v481 = vld [vmem:[#allocation4 + $0x334] sm:$0xff]
    %v482 = vld [vmem:[#allocation4 + $0x33c] sm:$0xff]
    %v483 = vld [vmem:[#allocation4 + $0x344] sm:$0xf]
    %v484 = vld [vmem:[#allocation4 + $0x348] sm:$0xff]
    %v485 = vld [vmem:[#allocation4 + $0x350] sm:$0xff]
    %v486 = vld [vmem:[#allocation4 + $0x358] sm:$0xf]
    %v487 = vld [vmem:[#allocation4 + $0x35c] sm:$0xff]
    %v488 = vld [vmem:[#allocation4 + $0x364] sm:$0xff]
    %v489 = vld [vmem:[#allocation4 + $0x36c] sm:$0xf]
    %v490 = vld [vmem:[#allocation4 + $0x370] sm:$0xff]
    %v491 = vld [vmem:[#allocation4 + $0x378] sm:$0xff]
    %v492 = vld [vmem:[#allocation4 + $0x380] sm:$0xf]
    %v493 = vld [vmem:[#allocation4 + $0x384] sm:$0xff]
    %v494 = vld [vmem:[#allocation4 + $0x38c] sm:$0xff]
    %v495 = vld [vmem:[#allocation4 + $0x394] sm:$0xf]
    %v496 = vld [vmem:[#allocation4 + $0x398] sm:$0xff]
    %v497 = vld [vmem:[#allocation4 + $0x3a0] sm:$0xff]
    %v498 = vld [vmem:[#allocation4 + $0x3a8] sm:$0xf]
    %v499 = vld [vmem:[#allocation4 + $0x3ac] sm:$0xff]
    %v500 = vld [vmem:[#allocation4 + $0x3b4] sm:$0xff]
    %v501 = vld [vmem:[#allocation4 + $0x3bc] sm:$0xf]
    %v502 = vld [vmem:[%s4] sm:$0x1f]
    %v504 = vlaneseq
    %v505 = vshrl.u32 %v504, 7
    %v506 = vsub.s32 0, %v505
    %v507 = vrot.slane %v502, %v506
    %v508 = vlaneseq
    %v509 = vshrl.u32 %v508, 7
    %v510 = vsub.s32 1, %v509
    %v511 = vrot.slane %v502, %v510
    %v512 = vlaneseq
    %v513 = vshrl.u32 %v512, 7
    %v514 = vsub.s32 2, %v513
    %v515 = vrot.slane %v502, %v514
    %v516 = vlaneseq
    %v517 = vshrl.u32 %v516, 7
    %v518 = vsub.s32 3, %v517
    %v519 = vrot.slane %v502, %v518
    %v520 = vlaneseq
    %v521 = vshrl.u32 %v520, 7
    %v522 = vsub.s32 4, %v521
    %v523 = vrot.slane %v502, %v522
    %v673 = vunpack.c.l.b16 %v358
    %v674 = vunpack.c.h.b16 %v358
    %v675 = vunpack.c.l.b16 %v359
    %v676 = vunpack.c.h.b16 %v359
    %v677 = vunpack.c.l.b16 %v360
    %v678 = vunpack.c.l.b16 %v361
    %v679 = vunpack.c.h.b16 %v361
    %v680 = vunpack.c.l.b16 %v362
    %v681 = vunpack.c.h.b16 %v362
    %v682 = vunpack.c.l.b16 %v363
    %v683 = vunpack.c.l.b16 %v364
    %v684 = vunpack.c.h.b16 %v364
    %v685 = vunpack.c.l.b16 %v365
    %v686 = vunpack.c.h.b16 %v365
    %v687 = vunpack.c.l.b16 %v366
    %v688 = vunpack.c.l.b16 %v367
    %v689 = vunpack.c.h.b16 %v367
    %v690 = vunpack.c.l.b16 %v368
    %v691 = vunpack.c.h.b16 %v368
    %v692 = vunpack.c.l.b16 %v369
    %v693 = vunpack.c.l.b16 %v370
    %v694 = vunpack.c.h.b16 %v370
    %v695 = vunpack.c.l.b16 %v371
    %v696 = vunpack.c.h.b16 %v371
    %v697 = vunpack.c.l.b16 %v372
    %v698 = vunpack.c.l.b16 %v373
    %v699 = vunpack.c.h.b16 %v373
    %v700 = vunpack.c.l.b16 %v374
    %v701 = vunpack.c.h.b16 %v374
    %v702 = vunpack.c.l.b16 %v375
    %v703 = vunpack.c.l.b16 %v376
    %v704 = vunpack.c.h.b16 %v376
    %v705 = vunpack.c.l.b16 %v377
    %v706 = vunpack.c.h.b16 %v377
    %v707 = vunpack.c.l.b16 %v378
    %v708 = vunpack.c.l.b16 %v379
    %v709 = vunpack.c.h.b16 %v379
    %v710 = vunpack.c.l.b16 %v380
    %v711 = vunpack.c.h.b16 %v380
    %v712 = vunpack.c.l.b16 %v381
    %v713 = vunpack.c.l.b16 %v382
    %v714 = vunpack.c.h.b16 %v382
    %v715 = vunpack.c.l.b16 %v383
    %v716 = vunpack.c.h.b16 %v383
    %v717 = vunpack.c.l.b16 %v384
    %v718 = vunpack.c.l.b16 %v385
    %v719 = vunpack.c.h.b16 %v385
    %v720 = vunpack.c.l.b16 %v386
    %v721 = vunpack.c.h.b16 %v386
    %v722 = vunpack.c.l.b16 %v387
    %v723 = vunpack.c.l.b16 %v388
    %v724 = vunpack.c.h.b16 %v388
    %v725 = vunpack.c.l.b16 %v389
    %v726 = vunpack.c.h.b16 %v389
    %v727 = vunpack.c.l.b16 %v390
    %v728 = vunpack.c.l.b16 %v391
    %v729 = vunpack.c.h.b16 %v391
    %v730 = vunpack.c.l.b16 %v392
    %v731 = vunpack.c.h.b16 %v392
    %v732 = vunpack.c.l.b16 %v393
    %v733 = vunpack.c.l.b16 %v394
    %v734 = vunpack.c.h.b16 %v394
    %v735 = vunpack.c.l.b16 %v395
    %v736 = vunpack.c.h.b16 %v395
    %v737 = vunpack.c.l.b16 %v396
    %v738 = vunpack.c.l.b16 %v397
    %v739 = vunpack.c.h.b16 %v397
    %v740 = vunpack.c.l.b16 %v398
    %v741 = vunpack.c.h.b16 %v398
    %v742 = vunpack.c.l.b16 %v399
    %v743 = vunpack.c.l.b16 %v400
    %v744 = vunpack.c.h.b16 %v400
    %v745 = vunpack.c.l.b16 %v401
    %v746 = vunpack.c.h.b16 %v401
    %v747 = vunpack.c.l.b16 %v402
    %v748 = vunpack.c.l.b16 %v403
    %v749 = vunpack.c.h.b16 %v403
    %v750 = vunpack.c.l.b16 %v404
    %v751 = vunpack.c.h.b16 %v404
    %v752 = vunpack.c.l.b16 %v405
    %v753 = vunpack.c.l.b16 %v406
    %v754 = vunpack.c.h.b16 %v406
    %v755 = vunpack.c.l.b16 %v407
    %v756 = vunpack.c.h.b16 %v407
    %v757 = vunpack.c.l.b16 %v408
    %v758 = vunpack.c.l.b16 %v409
    %v759 = vunpack.c.h.b16 %v409
    %v760 = vunpack.c.l.b16 %v410
    %v761 = vunpack.c.h.b16 %v410
    %v762 = vunpack.c.l.b16 %v411
    %v763 = vunpack.c.l.b16 %v412
    %v764 = vunpack.c.h.b16 %v412
    %v765 = vunpack.c.l.b16 %v413
    %v766 = vunpack.c.h.b16 %v413
    %v767 = vunpack.c.l.b16 %v414
    %v768 = vunpack.c.l.b16 %v415
    %v769 = vunpack.c.h.b16 %v415
    %v770 = vunpack.c.l.b16 %v416
    %v771 = vunpack.c.h.b16 %v416
    %v772 = vunpack.c.l.b16 %v417
    %v773 = vunpack.c.l.b16 %v418
    %v774 = vunpack.c.h.b16 %v418
    %v775 = vunpack.c.l.b16 %v419
    %v776 = vunpack.c.h.b16 %v419
    %v777 = vunpack.c.l.b16 %v420
    %v778 = vunpack.c.l.b16 %v421
    %v779 = vunpack.c.h.b16 %v421
    %v780 = vunpack.c.l.b16 %v422
    %v781 = vunpack.c.h.b16 %v422
    %v782 = vunpack.c.l.b16 %v423
    %v783 = vunpack.c.l.b16 %v424
    %v784 = vunpack.c.h.b16 %v424
    %v785 = vunpack.c.l.b16 %v425
    %v786 = vunpack.c.h.b16 %v425
    %v787 = vunpack.c.l.b16 %v426
    %v788 = vunpack.c.l.b16 %v427
    %v789 = vunpack.c.h.b16 %v427
    %v790 = vunpack.c.l.b16 %v428
    %v791 = vunpack.c.h.b16 %v428
    %v792 = vunpack.c.l.b16 %v429
    %v793 = vunpack.c.l.b16 %v430
    %v794 = vunpack.c.h.b16 %v430
    %v795 = vunpack.c.l.b16 %v431
    %v796 = vunpack.c.h.b16 %v431
    %v797 = vunpack.c.l.b16 %v432
    %v798 = vunpack.c.l.b16 %v433
    %v799 = vunpack.c.h.b16 %v433
    %v800 = vunpack.c.l.b16 %v434
    %v801 = vunpack.c.h.b16 %v434
    %v802 = vunpack.c.l.b16 %v435
    %v803 = vunpack.c.l.b16 %v436
    %v804 = vunpack.c.h.b16 %v436
    %v805 = vunpack.c.l.b16 %v437
    %v806 = vunpack.c.h.b16 %v437
    %v807 = vunpack.c.l.b16 %v438
    %v808 = vunpack.c.l.b16 %v439
    %v809 = vunpack.c.h.b16 %v439
    %v810 = vunpack.c.l.b16 %v440
    %v811 = vunpack.c.h.b16 %v440
    %v812 = vunpack.c.l.b16 %v441
    %v813 = vunpack.c.l.b16 %v442
    %v814 = vunpack.c.h.b16 %v442
    %v815 = vunpack.c.l.b16 %v443
    %v816 = vunpack.c.h.b16 %v443
    %v817 = vunpack.c.l.b16 %v444
    %v818 = vunpack.c.l.b16 %v445
    %v819 = vunpack.c.h.b16 %v445
    %v820 = vunpack.c.l.b16 %v446
    %v821 = vunpack.c.h.b16 %v446
    %v822 = vunpack.c.l.b16 %v447
    %v823 = vunpack.c.l.b16 %v448
    %v824 = vunpack.c.h.b16 %v448
    %v825 = vunpack.c.l.b16 %v449
    %v826 = vunpack.c.h.b16 %v449
    %v827 = vunpack.c.l.b16 %v450
    %v828 = vunpack.c.l.b16 %v451
    %v829 = vunpack.c.h.b16 %v451
    %v830 = vunpack.c.l.b16 %v452
    %v831 = vunpack.c.h.b16 %v452
    %v832 = vunpack.c.l.b16 %v453
    %v833 = vunpack.c.l.b16 %v454
    %v834 = vunpack.c.h.b16 %v454
    %v835 = vunpack.c.l.b16 %v455
    %v836 = vunpack.c.h.b16 %v455
    %v837 = vunpack.c.l.b16 %v456
    %v838 = vunpack.c.l.b16 %v457
    %v839 = vunpack.c.h.b16 %v457
    %v840 = vunpack.c.l.b16 %v458
    %v841 = vunpack.c.h.b16 %v458
    %v842 = vunpack.c.l.b16 %v459
    %v843 = vunpack.c.l.b16 %v460
    %v844 = vunpack.c.h.b16 %v460
    %v845 = vunpack.c.l.b16 %v461
    %v846 = vunpack.c.h.b16 %v461
    %v847 = vunpack.c.l.b16 %v462
    %v848 = vunpack.c.l.b16 %v463
    %v849 = vunpack.c.h.b16 %v463
    %v850 = vunpack.c.l.b16 %v464
    %v851 = vunpack.c.h.b16 %v464
    %v852 = vunpack.c.l.b16 %v465
    %v853 = vunpack.c.l.b16 %v466
    %v854 = vunpack.c.h.b16 %v466
    %v855 = vunpack.c.l.b16 %v467
    %v856 = vunpack.c.h.b16 %v467
    %v857 = vunpack.c.l.b16 %v468
    %v858 = vunpack.c.l.b16 %v469
    %v859 = vunpack.c.h.b16 %v469
    %v860 = vunpack.c.l.b16 %v470
    %v861 = vunpack.c.h.b16 %v470
    %v862 = vunpack.c.l.b16 %v471
    %v863 = vunpack.c.l.b16 %v472
    %v864 = vunpack.c.h.b16 %v472
    %v865 = vunpack.c.l.b16 %v473
    %v866 = vunpack.c.h.b16 %v473
    %v867 = vunpack.c.l.b16 %v474
    %v868 = vunpack.c.l.b16 %v475
    %v869 = vunpack.c.h.b16 %v475
    %v870 = vunpack.c.l.b16 %v476
    %v871 = vunpack.c.h.b16 %v476
    %v872 = vunpack.c.l.b16 %v477
    %v873 = vunpack.c.l.b16 %v478
    %v874 = vunpack.c.h.b16 %v478
    %v875 = vunpack.c.l.b16 %v479
    %v876 = vunpack.c.h.b16 %v479
    %v877 = vunpack.c.l.b16 %v480
    %v878 = vunpack.c.l.b16 %v481
    %v879 = vunpack.c.h.b16 %v481
    %v880 = vunpack.c.l.b16 %v482
    %v881 = vunpack.c.h.b16 %v482
    %v882 = vunpack.c.l.b16 %v483
    %v883 = vunpack.c.l.b16 %v484
    %v884 = vunpack.c.h.b16 %v484
    %v885 = vunpack.c.l.b16 %v485
    %v886 = vunpack.c.h.b16 %v485
    %v887 = vunpack.c.l.b16 %v486
    %v888 = vunpack.c.l.b16 %v487
    %v889 = vunpack.c.h.b16 %v487
    %v890 = vunpack.c.l.b16 %v488
    %v891 = vunpack.c.h.b16 %v488
    %v892 = vunpack.c.l.b16 %v489
    %v893 = vunpack.c.l.b16 %v490
    %v894 = vunpack.c.h.b16 %v490
    %v895 = vunpack.c.l.b16 %v491
    %v896 = vunpack.c.h.b16 %v491
    %v897 = vunpack.c.l.b16 %v492
    %v898 = vunpack.c.l.b16 %v493
    %v899 = vunpack.c.h.b16 %v493
    %v900 = vunpack.c.l.b16 %v494
    %v901 = vunpack.c.h.b16 %v494
    %v902 = vunpack.c.l.b16 %v495
    %v903 = vunpack.c.l.b16 %v496
    %v904 = vunpack.c.h.b16 %v496
    %v905 = vunpack.c.l.b16 %v497
    %v906 = vunpack.c.h.b16 %v497
    %v907 = vunpack.c.l.b16 %v498
    %v908 = vunpack.c.l.b16 %v499
    %v909 = vunpack.c.h.b16 %v499
    %v910 = vunpack.c.l.b16 %v500
    %v911 = vunpack.c.h.b16 %v500
    %v912 = vunpack.c.l.b16 %v501
    %v913 = vpack.c.b16 %v678, %v673
    %v914 = vpack.c.b16 %v679, %v674
    %v915 = vpack.c.b16 %v680, %v675
    %v916 = vpack.c.b16 %v681, %v676
    %v917 = vpack.c.b16 %v682, %v677
    %v918 = vpack.c.b16 %v688, %v683
    %v919 = vpack.c.b16 %v689, %v684
    %v920 = vpack.c.b16 %v690, %v685
    %v921 = vpack.c.b16 %v691, %v686
    %v922 = vpack.c.b16 %v692, %v687
    %v923 = vpack.c.b16 %v698, %v693
    %v924 = vpack.c.b16 %v699, %v694
    %v925 = vpack.c.b16 %v700, %v695
    %v926 = vpack.c.b16 %v701, %v696
    %v927 = vpack.c.b16 %v702, %v697
    %v928 = vpack.c.b16 %v708, %v703
    %v929 = vpack.c.b16 %v709, %v704
    %v930 = vpack.c.b16 %v710, %v705
    %v931 = vpack.c.b16 %v711, %v706
    %v932 = vpack.c.b16 %v712, %v707
    %v933 = vpack.c.b16 %v718, %v713
    %v934 = vpack.c.b16 %v719, %v714
    %v935 = vpack.c.b16 %v720, %v715
    %v936 = vpack.c.b16 %v721, %v716
    %v937 = vpack.c.b16 %v722, %v717
    %v938 = vpack.c.b16 %v728, %v723
    %v939 = vpack.c.b16 %v729, %v724
    %v940 = vpack.c.b16 %v730, %v725
    %v941 = vpack.c.b16 %v731, %v726
    %v942 = vpack.c.b16 %v732, %v727
    %v943 = vpack.c.b16 %v738, %v733
    %v944 = vpack.c.b16 %v739, %v734
    %v945 = vpack.c.b16 %v740, %v735
    %v946 = vpack.c.b16 %v741, %v736
    %v947 = vpack.c.b16 %v742, %v737
    %v948 = vpack.c.b16 %v748, %v743
    %v949 = vpack.c.b16 %v749, %v744
    %v950 = vpack.c.b16 %v750, %v745
    %v951 = vpack.c.b16 %v751, %v746
    %v952 = vpack.c.b16 %v752, %v747
    %v953 = vpack.c.b16 %v758, %v753
    %v954 = vpack.c.b16 %v759, %v754
    %v955 = vpack.c.b16 %v760, %v755
    %v956 = vpack.c.b16 %v761, %v756
    %v957 = vpack.c.b16 %v762, %v757
    %v958 = vpack.c.b16 %v768, %v763
    %v959 = vpack.c.b16 %v769, %v764
    %v960 = vpack.c.b16 %v770, %v765
    %v961 = vpack.c.b16 %v771, %v766
    %v962 = vpack.c.b16 %v772, %v767
    %v963 = vpack.c.b16 %v778, %v773
    %v964 = vpack.c.b16 %v779, %v774
    %v965 = vpack.c.b16 %v780, %v775
    %v966 = vpack.c.b16 %v781, %v776
    %v967 = vpack.c.b16 %v782, %v777
    %v968 = vpack.c.b16 %v788, %v783
    %v969 = vpack.c.b16 %v789, %v784
    %v970 = vpack.c.b16 %v790, %v785
    %v971 = vpack.c.b16 %v791, %v786
    %v972 = vpack.c.b16 %v792, %v787
    %v973 = vpack.c.b16 %v798, %v793
    %v974 = vpack.c.b16 %v799, %v794
    %v975 = vpack.c.b16 %v800, %v795
    %v976 = vpack.c.b16 %v801, %v796
    %v977 = vpack.c.b16 %v802, %v797
    %v978 = vpack.c.b16 %v808, %v803
    %v979 = vpack.c.b16 %v809, %v804
    %v980 = vpack.c.b16 %v810, %v805
    %v981 = vpack.c.b16 %v811, %v806
    %v982 = vpack.c.b16 %v812, %v807
    %v983 = vpack.c.b16 %v818, %v813
    %v984 = vpack.c.b16 %v819, %v814
    %v985 = vpack.c.b16 %v820, %v815
    %v986 = vpack.c.b16 %v821, %v816
    %v987 = vpack.c.b16 %v822, %v817
    %v988 = vpack.c.b16 %v828, %v823
    %v989 = vpack.c.b16 %v829, %v824
    %v990 = vpack.c.b16 %v830, %v825
    %v991 = vpack.c.b16 %v831, %v826
    %v992 = vpack.c.b16 %v832, %v827
    %v993 = vpack.c.b16 %v838, %v833
    %v994 = vpack.c.b16 %v839, %v834
    %v995 = vpack.c.b16 %v840, %v835
    %v996 = vpack.c.b16 %v841, %v836
    %v997 = vpack.c.b16 %v842, %v837
    %v998 = vpack.c.b16 %v848, %v843
    %v999 = vpack.c.b16 %v849, %v844
    %v1000 = vpack.c.b16 %v850, %v845
    %v1001 = vpack.c.b16 %v851, %v846
    %v1002 = vpack.c.b16 %v852, %v847
    %v1003 = vpack.c.b16 %v858, %v853
    %v1004 = vpack.c.b16 %v859, %v854
    %v1005 = vpack.c.b16 %v860, %v855
    %v1006 = vpack.c.b16 %v861, %v856
    %v1007 = vpack.c.b16 %v862, %v857
    %v1008 = vpack.c.b16 %v868, %v863
    %v1009 = vpack.c.b16 %v869, %v864
    %v1010 = vpack.c.b16 %v870, %v865
    %v1011 = vpack.c.b16 %v871, %v866
    %v1012 = vpack.c.b16 %v872, %v867
    %v1013 = vpack.c.b16 %v878, %v873
    %v1014 = vpack.c.b16 %v879, %v874
    %v1015 = vpack.c.b16 %v880, %v875
    %v1016 = vpack.c.b16 %v881, %v876
    %v1017 = vpack.c.b16 %v882, %v877
    %v1018 = vpack.c.b16 %v888, %v883
    %v1019 = vpack.c.b16 %v889, %v884
    %v1020 = vpack.c.b16 %v890, %v885
    %v1021 = vpack.c.b16 %v891, %v886
    %v1022 = vpack.c.b16 %v892, %v887
    %v1023 = vpack.c.b16 %v898, %v893
    %v1024 = vpack.c.b16 %v899, %v894
    %v1025 = vpack.c.b16 %v900, %v895
    %v1026 = vpack.c.b16 %v901, %v896
    %v1027 = vpack.c.b16 %v902, %v897
    %v1028 = vpack.c.b16 %v908, %v903
    %v1029 = vpack.c.b16 %v909, %v904
    %v1030 = vpack.c.b16 %v910, %v905
    %v1031 = vpack.c.b16 %v911, %v906
    %v1032 = vpack.c.b16 %v912, %v907
    %1153 = vmatprep.subr.bf16.mxu0 %v949
    %1154 = vmatpush1.bf16.msra.mxu0 %v948
    %1155 = vmatprep.subr.bf16.mxu0 %v944
    %1156 = vmatpush1.bf16.msra.mxu0 %v943
    %1157 = vmatprep.subr.bf16.mxu0 %v939
    %1158 = vmatpush1.bf16.msra.mxu0 %v938
    %1159 = vmatprep.subr.bf16.mxu0 %v934
    %1160 = vmatpush1.bf16.msra.mxu0 %v933
    %1161 = vmatprep.subr.bf16.mxu0 %v929
    %1162 = vmatpush1.bf16.msra.mxu0 %v928
    %1163 = vmatprep.subr.bf16.mxu0 %v924
    %1164 = vmatpush1.bf16.msra.mxu0 %v923
    %1165 = vmatprep.subr.bf16.mxu0 %v919
    %1166 = vmatpush1.bf16.msra.mxu0 %v918
    %1167 = vmatprep.subr.bf16.mxu0 %v914
    %1168 = vmatpush1.bf16.msra.mxu0 %v913
    %1169 = vmatprep.subr.bf16.mxu0 %v989
    %1170 = vmatpush2.bf16.msra.mxu0 %v988
    %1171 = vmatprep.subr.bf16.mxu0 %v984
    %1172 = vmatpush2.bf16.msra.mxu0 %v983
    %1173 = vmatprep.subr.bf16.mxu0 %v979
    %1174 = vmatpush2.bf16.msra.mxu0 %v978
    %1175 = vmatprep.subr.bf16.mxu0 %v974
    %1176 = vmatpush2.bf16.msra.mxu0 %v973
    %1177 = vmatprep.subr.bf16.mxu0 %v969
    %1178 = vmatpush2.bf16.msra.mxu0 %v968
    %1179 = vmatprep.subr.bf16.mxu0 %v964
    %1180 = vmatpush2.bf16.msra.mxu0 %v963
    %1181 = vmatprep.subr.bf16.mxu0 %v959
    %1182 = vmatpush2.bf16.msra.mxu0 %v958
    %1183 = vmatprep.subr.bf16.mxu0 %v954
    %1184 = vmatpush2.bf16.msra.mxu0 %v953
    %1185 = vmatprep.mubr.bf16.mxu0 %v356
    %1186 = vmatmul.mubr.bf16.gmra.mxu0 %v355
    %v1187 = vpop.f32.mrf.mxu0
    %v1188 = vadd.f32 %v507, %v1187
    %v1189 = vpop.f32.mrf.mxu0
    %v1190 = vadd.f32 %v511, %v1189
    %v1191 = vpop.f32.mrf.mxu0
    %v1192 = vpop.f32.mrf.mxu0
    %1193 = vdwg.mxu0
    %1194 = vmatprep.subr.bf16.mxu0 %v1029
    %1195 = vmatpush1.bf16.msra.mxu0 %v1028
    %1196 = vmatprep.subr.bf16.mxu0 %v1024
    %1197 = vmatpush1.bf16.msra.mxu0 %v1023
    %1198 = vmatprep.subr.bf16.mxu0 %v1019
    %1199 = vmatpush1.bf16.msra.mxu0 %v1018
    %1200 = vmatprep.subr.bf16.mxu0 %v1014
    %1201 = vmatpush1.bf16.msra.mxu0 %v1013
    %1202 = vmatprep.subr.bf16.mxu0 %v1009
    %1203 = vmatpush1.bf16.msra.mxu0 %v1008
    %1204 = vmatprep.subr.bf16.mxu0 %v1004
    %1205 = vmatpush1.bf16.msra.mxu0 %v1003
    %1206 = vmatprep.subr.bf16.mxu0 %v999
    %1207 = vmatpush1.bf16.msra.mxu0 %v998
    %1208 = vmatprep.subr.bf16.mxu0 %v994
    %1209 = vmatpush1.bf16.msra.mxu0 %v993
    %1210 = vmatprep.subr.bf16.mxu0 0
    %1211 = vmatpush2.bf16.msra.mxu0 0
    %1212 = vmatprep.subr.bf16.mxu0 0
    %1213 = vmatpush2.bf16.msra.mxu0 0
    %1214 = vmatprep.subr.bf16.mxu0 0
    %1215 = vmatpush2.bf16.msra.mxu0 0
    %1216 = vmatprep.subr.bf16.mxu0 0
    %1217 = vmatpush2.bf16.msra.mxu0 0
    %1218 = vmatprep.subr.bf16.mxu0 0
    %1219 = vmatpush2.bf16.msra.mxu0 0
    %1220 = vmatprep.subr.bf16.mxu0 0
    %1221 = vmatpush2.bf16.msra.mxu0 0
    %1222 = vmatprep.subr.bf16.mxu0 0
    %1223 = vmatpush2.bf16.msra.mxu0 0
    %1224 = vmatprep.subr.bf16.mxu0 0
    %1225 = vmatpush2.bf16.msra.mxu0 0
    %1226 = vmatprep.mubr.bf16.mxu0 0
    %1227 = vmatmul.mubr.bf16.gmra.mxu0 %v357
    %v1228 = vpop.f32.mrf.mxu0
    %v1229 = vadd.f32 %v1188, %v1228
    %v1230 = vpop.f32.mrf.mxu0
    %v1231 = vadd.f32 %v1190, %v1230
    %v1232 = vpop.f32.mrf.mxu0
    %v1233 = vpop.f32.mrf.mxu0
    %1234 = vdwg.mxu0
    %1235 = vmatprep.subr.bf16.mxu0 %v951
    %1236 = vmatpush1.bf16.msra.mxu0 %v950
    %1237 = vmatprep.subr.bf16.mxu0 %v946
    %1238 = vmatpush1.bf16.msra.mxu0 %v945
    %1239 = vmatprep.subr.bf16.mxu0 %v941
    %1240 = vmatpush1.bf16.msra.mxu0 %v940
    %1241 = vmatprep.subr.bf16.mxu0 %v936
    %1242 = vmatpush1.bf16.msra.mxu0 %v935
    %1243 = vmatprep.subr.bf16.mxu0 %v931
    %1244 = vmatpush1.bf16.msra.mxu0 %v930
    %1245 = vmatprep.subr.bf16.mxu0 %v926
    %1246 = vmatpush1.bf16.msra.mxu0 %v925
    %1247 = vmatprep.subr.bf16.mxu0 %v921
    %1248 = vmatpush1.bf16.msra.mxu0 %v920
    %1249 = vmatprep.subr.bf16.mxu0 %v916
    %1250 = vmatpush1.bf16.msra.mxu0 %v915
    %1251 = vmatprep.subr.bf16.mxu0 %v991
    %1252 = vmatpush2.bf16.msra.mxu0 %v990
    %1253 = vmatprep.subr.bf16.mxu0 %v986
    %1254 = vmatpush2.bf16.msra.mxu0 %v985
    %1255 = vmatprep.subr.bf16.mxu0 %v981
    %1256 = vmatpush2.bf16.msra.mxu0 %v980
    %1257 = vmatprep.subr.bf16.mxu0 %v976
    %1258 = vmatpush2.bf16.msra.mxu0 %v975
    %1259 = vmatprep.subr.bf16.mxu0 %v971
    %1260 = vmatpush2.bf16.msra.mxu0 %v970
    %1261 = vmatprep.subr.bf16.mxu0 %v966
    %1262 = vmatpush2.bf16.msra.mxu0 %v965
    %1263 = vmatprep.subr.bf16.mxu0 %v961
    %1264 = vmatpush2.bf16.msra.mxu0 %v960
    %1265 = vmatprep.subr.bf16.mxu0 %v956
    %1266 = vmatpush2.bf16.msra.mxu0 %v955
    %1267 = vmatprep.mubr.bf16.mxu0 %v356
    %1268 = vmatmul.mubr.bf16.gmra.mxu0 %v355
    %v1269 = vpop.f32.mrf.mxu0
    %v1270 = vadd.f32 %v515, %v1269
    %v1271 = vpop.f32.mrf.mxu0
    %v1272 = vadd.f32 %v519, %v1271
    %v1273 = vpop.f32.mrf.mxu0
    %v1274 = vpop.f32.mrf.mxu0
    %1275 = vdwg.mxu0
    %1276 = vmatprep.subr.bf16.mxu0 %v1031
    %1277 = vmatpush1.bf16.msra.mxu0 %v1030
    %1278 = vmatprep.subr.bf16.mxu0 %v1026
    %1279 = vmatpush1.bf16.msra.mxu0 %v1025
    %1280 = vmatprep.subr.bf16.mxu0 %v1021
    %1281 = vmatpush1.bf16.msra.mxu0 %v1020
    %1282 = vmatprep.subr.bf16.mxu0 %v1016
    %1283 = vmatpush1.bf16.msra.mxu0 %v1015
    %1284 = vmatprep.subr.bf16.mxu0 %v1011
    %1285 = vmatpush1.bf16.msra.mxu0 %v1010
    %1286 = vmatprep.subr.bf16.mxu0 %v1006
    %1287 = vmatpush1.bf16.msra.mxu0 %v1005
    %1288 = vmatprep.subr.bf16.mxu0 %v1001
    %1289 = vmatpush1.bf16.msra.mxu0 %v1000
    %1290 = vmatprep.subr.bf16.mxu0 %v996
    %1291 = vmatpush1.bf16.msra.mxu0 %v995
    %1292 = vmatprep.subr.bf16.mxu0 0
    %1293 = vmatpush2.bf16.msra.mxu0 0
    %1294 = vmatprep.subr.bf16.mxu0 0
    %1295 = vmatpush2.bf16.msra.mxu0 0
    %1296 = vmatprep.subr.bf16.mxu0 0
    %1297 = vmatpush2.bf16.msra.mxu0 0
    %1298 = vmatprep.subr.bf16.mxu0 0
    %1299 = vmatpush2.bf16.msra.mxu0 0
    %1300 = vmatprep.subr.bf16.mxu0 0
    %1301 = vmatpush2.bf16.msra.mxu0 0
    %1302 = vmatprep.subr.bf16.mxu0 0
    %1303 = vmatpush2.bf16.msra.mxu0 0
    %1304 = vmatprep.subr.bf16.mxu0 0
    %1305 = vmatpush2.bf16.msra.mxu0 0
    %1306 = vmatprep.subr.bf16.mxu0 0
    %1307 = vmatpush2.bf16.msra.mxu0 0
    %1308 = vmatprep.mubr.bf16.mxu0 0
    %1309 = vmatmul.mubr.bf16.gmra.mxu0 %v357
    %v1310 = vpop.f32.mrf.mxu0
    %v1311 = vadd.f32 %v1270, %v1310
    %v1312 = vpop.f32.mrf.mxu0
    %v1313 = vadd.f32 %v1272, %v1312
    %v1314 = vpop.f32.mrf.mxu0
    %v1315 = vpop.f32.mrf.mxu0
    %1316 = vdwg.mxu0
    %1317 = vmatprep.subr.bf16.mxu0 0
    %1318 = vmatpush1.bf16.msra.mxu0 %v952
    %1319 = vmatprep.subr.bf16.mxu0 0
    %1320 = vmatpush1.bf16.msra.mxu0 %v947
    %1321 = vmatprep.subr.bf16.mxu0 0
    %1322 = vmatpush1.bf16.msra.mxu0 %v942
    %1323 = vmatprep.subr.bf16.mxu0 0
    %1324 = vmatpush1.bf16.msra.mxu0 %v937
    %1325 = vmatprep.subr.bf16.mxu0 0
    %1326 = vmatpush1.bf16.msra.mxu0 %v932
    %1327 = vmatprep.subr.bf16.mxu0 0
    %1328 = vmatpush1.bf16.msra.mxu0 %v927
    %1329 = vmatprep.subr.bf16.mxu0 0
    %1330 = vmatpush1.bf16.msra.mxu0 %v922
    %1331 = vmatprep.subr.bf16.mxu0 0
    %1332 = vmatpush1.bf16.msra.mxu0 %v917
    %1333 = vmatprep.subr.bf16.mxu0 0
    %1334 = vmatpush2.bf16.msra.mxu0 %v992
    %1335 = vmatprep.subr.bf16.mxu0 0
    %1336 = vmatpush2.bf16.msra.mxu0 %v987
    %1337 = vmatprep.subr.bf16.mxu0 0
    %1338 = vmatpush2.bf16.msra.mxu0 %v982
    %1339 = vmatprep.subr.bf16.mxu0 0
    %1340 = vmatpush2.bf16.msra.mxu0 %v977
    %1341 = vmatprep.subr.bf16.mxu0 0
    %1342 = vmatpush2.bf16.msra.mxu0 %v972
    %1343 = vmatprep.subr.bf16.mxu0 0
    %1344 = vmatpush2.bf16.msra.mxu0 %v967
    %1345 = vmatprep.subr.bf16.mxu0 0
    %1346 = vmatpush2.bf16.msra.mxu0 %v962
    %1347 = vmatprep.subr.bf16.mxu0 0
    %1348 = vmatpush2.bf16.msra.mxu0 %v957
    %1349 = vmatprep.mubr.bf16.mxu0 %v356
    %1350 = vmatmul.mubr.bf16.gmra.mxu0 %v355
    %v1351 = vpop.f32.mrf.mxu0
    %v1352 = vadd.f32 %v523, %v1351
    %v1353 = vpop.f32.mrf.mxu0
    %v1354 = vpop.f32.mrf.mxu0
    %v1355 = vpop.f32.mrf.mxu0
    %1356 = vdwg.mxu0
    %1357 = vmatprep.subr.bf16.mxu0 0
    %1358 = vmatpush1.bf16.msra.mxu0 %v1032
    %1359 = vmatprep.subr.bf16.mxu0 0
    %1360 = vmatpush1.bf16.msra.mxu0 %v1027
    %1361 = vmatprep.subr.bf16.mxu0 0
    %1362 = vmatpush1.bf16.msra.mxu0 %v1022
    %1363 = vmatprep.subr.bf16.mxu0 0
    %1364 = vmatpush1.bf16.msra.mxu0 %v1017
    %1365 = vmatprep.subr.bf16.mxu0 0
    %1366 = vmatpush1.bf16.msra.mxu0 %v1012
    %1367 = vmatprep.subr.bf16.mxu0 0
    %1368 = vmatpush1.bf16.msra.mxu0 %v1007
    %1369 = vmatprep.subr.bf16.mxu0 0
    %1370 = vmatpush1.bf16.msra.mxu0 %v1002
    %1371 = vmatprep.subr.bf16.mxu0 0
    %1372 = vmatpush1.bf16.msra.mxu0 %v997
    %1373 = vmatprep.subr.bf16.mxu0 0
    %1374 = vmatpush2.bf16.msra.mxu0 0
    %1375 = vmatprep.subr.bf16.mxu0 0
    %1376 = vmatpush2.bf16.msra.mxu0 0
    %1377 = vmatprep.subr.bf16.mxu0 0
    %1378 = vmatpush2.bf16.msra.mxu0 0
    %1379 = vmatprep.subr.bf16.mxu0 0
    %1380 = vmatpush2.bf16.msra.mxu0 0
    %1381 = vmatprep.subr.bf16.mxu0 0
    %1382 = vmatpush2.bf16.msra.mxu0 0
    %1383 = vmatprep.subr.bf16.mxu0 0
    %1384 = vmatpush2.bf16.msra.mxu0 0
    %1385 = vmatprep.subr.bf16.mxu0 0
    %1386 = vmatpush2.bf16.msra.mxu0 0
    %1387 = vmatprep.subr.bf16.mxu0 0
    %1388 = vmatpush2.bf16.msra.mxu0 0
    %1389 = vmatprep.mubr.bf16.mxu0 0
    %1390 = vmatmul.mubr.bf16.gmra.mxu0 %v357
    %v1391 = vpop.f32.mrf.mxu0
    %v1392 = vadd.f32 %v1352, %v1391
    %v1393 = vpop.f32.mrf.mxu0
    %v1394 = vpop.f32.mrf.mxu0
    %v1395 = vpop.f32.mrf.mxu0
    %1396 = vdwg.mxu0
    %v1397 = vmax.f32 %v1229, 0.0
    %v1398 = vmax.f32 %v1231, 0.0
    %v1399 = vmax.f32 %v1311, 0.0
    %v1400 = vmax.f32 %v1313, 0.0
    %v1401 = vmax.f32 %v1392, 0.0
    %v1402 = vpack.c.bf16 %v1397, %v1397
    %v1403 = vpack.c.bf16 %v1398, %v1398
    %v1404 = vpack.c.bf16 %v1399, %v1399
    %v1405 = vpack.c.bf16 %v1400, %v1400
    %v1406 = vpack.c.bf16 %v1401, %v1401
    %v1407 = vld [vmem:[#allocation6] sm:$0xf]
    %v1408 = vld [vmem:[#allocation6 + $0x4] sm:$0xf]
    %v1409 = vld [vmem:[#allocation6 + $0x8] sm:$0xf]
    %v1410 = vld [vmem:[#allocation6 + $0xc] sm:$0xf]
    %v1411 = vld [vmem:[#allocation6 + $0x10] sm:$0xf]
    %v1412 = vld [vmem:[#allocation6 + $0x14] sm:$0xf]
    %v1413 = vld [vmem:[#allocation6 + $0x18] sm:$0xf]
    %v1414 = vld [vmem:[#allocation6 + $0x1c] sm:$0xf]
    %v1415 = vld [vmem:[#allocation6 + $0x20] sm:$0xf]
    %v1416 = vld [vmem:[#allocation6 + $0x24] sm:$0xf]
    %v1417 = vld [vmem:[#allocation6 + $0x28] sm:$0xf]
    %v1418 = vld [vmem:[#allocation6 + $0x2c] sm:$0xf]
    %v1419 = vld [vmem:[#allocation6 + $0x30] sm:$0xf]
    %v1420 = vld [vmem:[#allocation6 + $0x34] sm:$0xf]
    %v1421 = vld [vmem:[#allocation6 + $0x38] sm:$0xf]
    %v1422 = vld [vmem:[#allocation6 + $0x3c] sm:$0xf]
    %v1423 = vld [vmem:[#allocation6 + $0x40] sm:$0xf]
    %v1424 = vld [vmem:[#allocation6 + $0x44] sm:$0xf]
    %v1425 = vld [vmem:[#allocation6 + $0x48] sm:$0xf]
    %v1426 = vld [vmem:[#allocation6 + $0x4c] sm:$0xf]
    %v1427 = vld [vmem:[#allocation6 + $0x50] sm:$0xf]
    %v1428 = vld [vmem:[#allocation6 + $0x54] sm:$0xf]
    %v1429 = vld [vmem:[#allocation6 + $0x58] sm:$0xf]
    %v1430 = vld [vmem:[#allocation6 + $0x5c] sm:$0xf]
    %v1431 = vld [vmem:[#allocation6 + $0x60] sm:$0xf]
    %v1432 = vld [vmem:[#allocation6 + $0x64] sm:$0xf]
    %v1433 = vld [vmem:[#allocation6 + $0x68] sm:$0xf]
    %v1434 = vld [vmem:[#allocation6 + $0x6c] sm:$0xf]
    %v1435 = vld [vmem:[#allocation6 + $0x70] sm:$0xf]
    %v1436 = vld [vmem:[#allocation6 + $0x74] sm:$0xf]
    %v1437 = vld [vmem:[#allocation6 + $0x78] sm:$0xf]
    %v1438 = vld [vmem:[#allocation6 + $0x7c] sm:$0xf]
    %v1439 = vld [vmem:[#allocation6 + $0x80] sm:$0xf]
    %v1440 = vld [vmem:[#allocation6 + $0x84] sm:$0xf]
    %v1441 = vld [vmem:[#allocation6 + $0x88] sm:$0xf]
    %v1442 = vld [vmem:[#allocation6 + $0x8c] sm:$0xf]
    %v1443 = vld [vmem:[#allocation6 + $0x90] sm:$0xf]
    %v1444 = vld [vmem:[#allocation6 + $0x94] sm:$0xf]
    %v1445 = vld [vmem:[#allocation6 + $0x98] sm:$0xf]
    %v1446 = vld [vmem:[#allocation6 + $0x9c] sm:$0xf]
    %v1447 = vld [vmem:[#allocation6 + $0xa0] sm:$0xf]
    %v1448 = vld [vmem:[#allocation6 + $0xa4] sm:$0xf]
    %v1449 = vld [vmem:[#allocation6 + $0xa8] sm:$0xf]
    %v1450 = vld [vmem:[#allocation6 + $0xac] sm:$0xf]
    %v1451 = vld [vmem:[#allocation6 + $0xb0] sm:$0xf]
    %v1452 = vld [vmem:[#allocation6 + $0xb4] sm:$0xf]
    %v1453 = vld [vmem:[#allocation6 + $0xb8] sm:$0xf]
    %v1454 = vld [vmem:[#allocation6 + $0xbc] sm:$0xf]
    %v1455 = vld [vmem:[#allocation6 + $0xc0] sm:$0xf]
    %v1456 = vld [vmem:[#allocation6 + $0xc4] sm:$0xf]
    %v1457 = vld [vmem:[#allocation6 + $0xc8] sm:$0xf]
    %v1458 = vld [vmem:[#allocation6 + $0xcc] sm:$0xf]
    %v1459 = vld [vmem:[#allocation6 + $0xd0] sm:$0xf]
    %v1460 = vld [vmem:[#allocation6 + $0xd4] sm:$0xf]
    %v1461 = vld [vmem:[#allocation6 + $0xd8] sm:$0xf]
    %v1462 = vld [vmem:[#allocation6 + $0xdc] sm:$0xf]
    %v1463 = vld [vmem:[#allocation6 + $0xe0] sm:$0xf]
    %v1464 = vld [vmem:[#allocation6 + $0xe4] sm:$0xf]
    %v1465 = vld [vmem:[#allocation6 + $0xe8] sm:$0xf]
    %v1466 = vld [vmem:[#allocation6 + $0xec] sm:$0xf]
    %v1467 = vld [vmem:[#allocation6 + $0xf0] sm:$0xf]
    %v1468 = vld [vmem:[#allocation6 + $0xf4] sm:$0xf]
    %v1469 = vld [vmem:[#allocation6 + $0xf8] sm:$0xf]
    %v1470 = vld [vmem:[#allocation6 + $0xfc] sm:$0xf]
    %v1471 = vld [vmem:[#allocation6 + $0x100] sm:$0xf]
    %v1472 = vld [vmem:[#allocation6 + $0x104] sm:$0xf]
    %v1473 = vld [vmem:[#allocation6 + $0x108] sm:$0xf]
    %v1474 = vld [vmem:[#allocation6 + $0x10c] sm:$0xf]
    %v1475 = vld [vmem:[#allocation6 + $0x110] sm:$0xf]
    %v1476 = vld [vmem:[#allocation6 + $0x114] sm:$0xf]
    %v1477 = vld [vmem:[#allocation6 + $0x118] sm:$0xf]
    %v1478 = vld [vmem:[#allocation6 + $0x11c] sm:$0xf]
    %v1479 = vld [vmem:[#allocation6 + $0x120] sm:$0xf]
    %v1480 = vld [vmem:[#allocation6 + $0x124] sm:$0xf]
    %v1481 = vld [vmem:[#allocation6 + $0x128] sm:$0xf]
    %v1482 = vld [vmem:[#allocation6 + $0x12c] sm:$0xf]
    %v1483 = vld [vmem:[#allocation6 + $0x130] sm:$0xf]
    %v1484 = vld [vmem:[#allocation6 + $0x134] sm:$0xf]
    %v1485 = vld [vmem:[#allocation6 + $0x138] sm:$0xf]
    %v1486 = vld [vmem:[#allocation6 + $0x13c] sm:$0xf]
    %v1487 = vld [vmem:[%s6] sm:$0x1]
    %v1489 = vlaneseq
    %v1490 = vshrl.u32 %v1489, 7
    %v1491 = vsub.s32 0, %v1490
    %v1492 = vrot.slane %v1487, %v1491
    %v1574 = vunpack.c.l.b16 %v1407
    %v1575 = vunpack.c.l.b16 %v1408
    %v1576 = vunpack.c.l.b16 %v1409
    %v1577 = vunpack.c.l.b16 %v1410
    %v1578 = vunpack.c.l.b16 %v1411
    %v1579 = vunpack.c.l.b16 %v1412
    %v1580 = vunpack.c.l.b16 %v1413
    %v1581 = vunpack.c.l.b16 %v1414
    %v1582 = vunpack.c.l.b16 %v1415
    %v1583 = vunpack.c.l.b16 %v1416
    %v1584 = vunpack.c.l.b16 %v1417
    %v1585 = vunpack.c.l.b16 %v1418
    %v1586 = vunpack.c.l.b16 %v1419
    %v1587 = vunpack.c.l.b16 %v1420
    %v1588 = vunpack.c.l.b16 %v1421
    %v1589 = vunpack.c.l.b16 %v1422
    %v1590 = vunpack.c.l.b16 %v1423
    %v1591 = vunpack.c.l.b16 %v1424
    %v1592 = vunpack.c.l.b16 %v1425
    %v1593 = vunpack.c.l.b16 %v1426
    %v1594 = vunpack.c.l.b16 %v1427
    %v1595 = vunpack.c.l.b16 %v1428
    %v1596 = vunpack.c.l.b16 %v1429
    %v1597 = vunpack.c.l.b16 %v1430
    %v1598 = vunpack.c.l.b16 %v1431
    %v1599 = vunpack.c.l.b16 %v1432
    %v1600 = vunpack.c.l.b16 %v1433
    %v1601 = vunpack.c.l.b16 %v1434
    %v1602 = vunpack.c.l.b16 %v1435
    %v1603 = vunpack.c.l.b16 %v1436
    %v1604 = vunpack.c.l.b16 %v1437
    %v1605 = vunpack.c.l.b16 %v1438
    %v1606 = vunpack.c.l.b16 %v1439
    %v1607 = vunpack.c.l.b16 %v1440
    %v1608 = vunpack.c.l.b16 %v1441
    %v1609 = vunpack.c.l.b16 %v1442
    %v1610 = vunpack.c.l.b16 %v1443
    %v1611 = vunpack.c.l.b16 %v1444
    %v1612 = vunpack.c.l.b16 %v1445
    %v1613 = vunpack.c.l.b16 %v1446
    %v1614 = vunpack.c.l.b16 %v1447
    %v1615 = vunpack.c.l.b16 %v1448
    %v1616 = vunpack.c.l.b16 %v1449
    %v1617 = vunpack.c.l.b16 %v1450
    %v1618 = vunpack.c.l.b16 %v1451
    %v1619 = vunpack.c.l.b16 %v1452
    %v1620 = vunpack.c.l.b16 %v1453
    %v1621 = vunpack.c.l.b16 %v1454
    %v1622 = vunpack.c.l.b16 %v1455
    %v1623 = vunpack.c.l.b16 %v1456
    %v1624 = vunpack.c.l.b16 %v1457
    %v1625 = vunpack.c.l.b16 %v1458
    %v1626 = vunpack.c.l.b16 %v1459
    %v1627 = vunpack.c.l.b16 %v1460
    %v1628 = vunpack.c.l.b16 %v1461
    %v1629 = vunpack.c.l.b16 %v1462
    %v1630 = vunpack.c.l.b16 %v1463
    %v1631 = vunpack.c.l.b16 %v1464
    %v1632 = vunpack.c.l.b16 %v1465
    %v1633 = vunpack.c.l.b16 %v1466
    %v1634 = vunpack.c.l.b16 %v1467
    %v1635 = vunpack.c.l.b16 %v1468
    %v1636 = vunpack.c.l.b16 %v1469
    %v1637 = vunpack.c.l.b16 %v1470
    %v1638 = vunpack.c.l.b16 %v1471
    %v1639 = vunpack.c.l.b16 %v1472
    %v1640 = vunpack.c.l.b16 %v1473
    %v1641 = vunpack.c.l.b16 %v1474
    %v1642 = vunpack.c.l.b16 %v1475
    %v1643 = vunpack.c.l.b16 %v1476
    %v1644 = vunpack.c.l.b16 %v1477
    %v1645 = vunpack.c.l.b16 %v1478
    %v1646 = vunpack.c.l.b16 %v1479
    %v1647 = vunpack.c.l.b16 %v1480
    %v1648 = vunpack.c.l.b16 %v1481
    %v1649 = vunpack.c.l.b16 %v1482
    %v1650 = vunpack.c.l.b16 %v1483
    %v1651 = vunpack.c.l.b16 %v1484
    %v1652 = vunpack.c.l.b16 %v1485
    %v1653 = vunpack.c.l.b16 %v1486
    %v1654 = vpack.c.b16 %v1575, %v1574
    %v1655 = vpack.c.b16 %v1577, %v1576
    %v1656 = vpack.c.b16 %v1579, %v1578
    %v1657 = vpack.c.b16 %v1581, %v1580
    %v1658 = vpack.c.b16 %v1583, %v1582
    %v1659 = vpack.c.b16 %v1585, %v1584
    %v1660 = vpack.c.b16 %v1587, %v1586
    %v1661 = vpack.c.b16 %v1589, %v1588
    %v1662 = vpack.c.b16 %v1591, %v1590
    %v1663 = vpack.c.b16 %v1593, %v1592
    %v1664 = vpack.c.b16 %v1595, %v1594
    %v1665 = vpack.c.b16 %v1597, %v1596
    %v1666 = vpack.c.b16 %v1599, %v1598
    %v1667 = vpack.c.b16 %v1601, %v1600
    %v1668 = vpack.c.b16 %v1603, %v1602
    %v1669 = vpack.c.b16 %v1605, %v1604
    %v1670 = vpack.c.b16 %v1607, %v1606
    %v1671 = vpack.c.b16 %v1609, %v1608
    %v1672 = vpack.c.b16 %v1611, %v1610
    %v1673 = vpack.c.b16 %v1613, %v1612
    %v1674 = vpack.c.b16 %v1615, %v1614
    %v1675 = vpack.c.b16 %v1617, %v1616
    %v1676 = vpack.c.b16 %v1619, %v1618
    %v1677 = vpack.c.b16 %v1621, %v1620
    %v1678 = vpack.c.b16 %v1623, %v1622
    %v1679 = vpack.c.b16 %v1625, %v1624
    %v1680 = vpack.c.b16 %v1627, %v1626
    %v1681 = vpack.c.b16 %v1629, %v1628
    %v1682 = vpack.c.b16 %v1631, %v1630
    %v1683 = vpack.c.b16 %v1633, %v1632
    %v1684 = vpack.c.b16 %v1635, %v1634
    %v1685 = vpack.c.b16 %v1637, %v1636
    %v1686 = vpack.c.b16 %v1639, %v1638
    %v1687 = vpack.c.b16 %v1641, %v1640
    %v1688 = vpack.c.b16 %v1643, %v1642
    %v1689 = vpack.c.b16 %v1645, %v1644
    %v1690 = vpack.c.b16 %v1647, %v1646
    %v1691 = vpack.c.b16 %v1649, %v1648
    %v1692 = vpack.c.b16 %v1651, %v1650
    %v1693 = vpack.c.b16 %v1653, %v1652
    %1734 = vmatprep.subr.bf16.mxu0 0
    %1735 = vmatpush1.bf16.msra.mxu0 %v1661
    %1736 = vmatprep.subr.bf16.mxu0 0
    %1737 = vmatpush1.bf16.msra.mxu0 %v1660
    %1738 = vmatprep.subr.bf16.mxu0 0
    %1739 = vmatpush1.bf16.msra.mxu0 %v1659
    %1740 = vmatprep.subr.bf16.mxu0 0
    %1741 = vmatpush1.bf16.msra.mxu0 %v1658
    %1742 = vmatprep.subr.bf16.mxu0 0
    %1743 = vmatpush1.bf16.msra.mxu0 %v1657
    %1744 = vmatprep.subr.bf16.mxu0 0
    %1745 = vmatpush1.bf16.msra.mxu0 %v1656
    %1746 = vmatprep.subr.bf16.mxu0 0
    %1747 = vmatpush1.bf16.msra.mxu0 %v1655
    %1748 = vmatprep.subr.bf16.mxu0 0
    %1749 = vmatpush1.bf16.msra.mxu0 %v1654
    %1750 = vmatprep.subr.bf16.mxu0 0
    %1751 = vmatpush2.bf16.msra.mxu0 %v1669
    %1752 = vmatprep.subr.bf16.mxu0 0
    %1753 = vmatpush2.bf16.msra.mxu0 %v1668
    %1754 = vmatprep.subr.bf16.mxu0 0
    %1755 = vmatpush2.bf16.msra.mxu0 %v1667
    %1756 = vmatprep.subr.bf16.mxu0 0
    %1757 = vmatpush2.bf16.msra.mxu0 %v1666
    %1758 = vmatprep.subr.bf16.mxu0 0
    %1759 = vmatpush2.bf16.msra.mxu0 %v1665
    %1760 = vmatprep.subr.bf16.mxu0 0
    %1761 = vmatpush2.bf16.msra.mxu0 %v1664
    %1762 = vmatprep.subr.bf16.mxu0 0
    %1763 = vmatpush2.bf16.msra.mxu0 %v1663
    %1764 = vmatprep.subr.bf16.mxu0 0
    %1765 = vmatpush2.bf16.msra.mxu0 %v1662
    %1766 = vmatprep.mubr.bf16.mxu0 %v1403
    %1767 = vmatmul.mubr.bf16.gmra.mxu0 %v1402
    %v1768 = vpop.f32.mrf.mxu0
    %v1769 = vadd.f32 %v1492, %v1768
    %v1770 = vpop.f32.mrf.mxu0
    %v1771 = vpop.f32.mrf.mxu0
    %v1772 = vpop.f32.mrf.mxu0
    %1773 = vdwg.mxu0
    %1774 = vmatprep.subr.bf16.mxu0 0
    %1775 = vmatpush1.bf16.msra.mxu0 %v1677
    %1776 = vmatprep.subr.bf16.mxu0 0
    %1777 = vmatpush1.bf16.msra.mxu0 %v1676
    %1778 = vmatprep.subr.bf16.mxu0 0
    %1779 = vmatpush1.bf16.msra.mxu0 %v1675
    %1780 = vmatprep.subr.bf16.mxu0 0
    %1781 = vmatpush1.bf16.msra.mxu0 %v1674
    %1782 = vmatprep.subr.bf16.mxu0 0
    %1783 = vmatpush1.bf16.msra.mxu0 %v1673
    %1784 = vmatprep.subr.bf16.mxu0 0
    %1785 = vmatpush1.bf16.msra.mxu0 %v1672
    %1786 = vmatprep.subr.bf16.mxu0 0
    %1787 = vmatpush1.bf16.msra.mxu0 %v1671
    %1788 = vmatprep.subr.bf16.mxu0 0
    %1789 = vmatpush1.bf16.msra.mxu0 %v1670
    %1790 = vmatprep.subr.bf16.mxu0 0
    %1791 = vmatpush2.bf16.msra.mxu0 %v1685
    %1792 = vmatprep.subr.bf16.mxu0 0
    %1793 = vmatpush2.bf16.msra.mxu0 %v1684
    %1794 = vmatprep.subr.bf16.mxu0 0
    %1795 = vmatpush2.bf16.msra.mxu0 %v1683
    %1796 = vmatprep.subr.bf16.mxu0 0
    %1797 = vmatpush2.bf16.msra.mxu0 %v1682
    %1798 = vmatprep.subr.bf16.mxu0 0
    %1799 = vmatpush2.bf16.msra.mxu0 %v1681
    %1800 = vmatprep.subr.bf16.mxu0 0
    %1801 = vmatpush2.bf16.msra.mxu0 %v1680
    %1802 = vmatprep.subr.bf16.mxu0 0
    %1803 = vmatpush2.bf16.msra.mxu0 %v1679
    %1804 = vmatprep.subr.bf16.mxu0 0
    %1805 = vmatpush2.bf16.msra.mxu0 %v1678
    %1806 = vmatprep.mubr.bf16.mxu0 %v1405
    %1807 = vmatmul.mubr.bf16.gmra.mxu0 %v1404
    %v1808 = vpop.f32.mrf.mxu0
    %v1809 = vadd.f32 %v1769, %v1808
    %v1810 = vpop.f32.mrf.mxu0
    %v1811 = vpop.f32.mrf.mxu0
    %v1812 = vpop.f32.mrf.mxu0
    %1813 = vdwg.mxu0
    %1814 = vmatprep.subr.bf16.mxu0 0
    %1815 = vmatpush1.bf16.msra.mxu0 %v1693
    %1816 = vmatprep.subr.bf16.mxu0 0
    %1817 = vmatpush1.bf16.msra.mxu0 %v1692
    %1818 = vmatprep.subr.bf16.mxu0 0
    %1819 = vmatpush1.bf16.msra.mxu0 %v1691
    %1820 = vmatprep.subr.bf16.mxu0 0
    %1821 = vmatpush1.bf16.msra.mxu0 %v1690
    %1822 = vmatprep.subr.bf16.mxu0 0
    %1823 = vmatpush1.bf16.msra.mxu0 %v1689
    %1824 = vmatprep.subr.bf16.mxu0 0
    %1825 = vmatpush1.bf16.msra.mxu0 %v1688
    %1826 = vmatprep.subr.bf16.mxu0 0
    %1827 = vmatpush1.bf16.msra.mxu0 %v1687
    %1828 = vmatprep.subr.bf16.mxu0 0
    %1829 = vmatpush1.bf16.msra.mxu0 %v1686
    %1830 = vmatprep.subr.bf16.mxu0 0
    %1831 = vmatpush2.bf16.msra.mxu0 0
    %1832 = vmatprep.subr.bf16.mxu0 0
    %1833 = vmatpush2.bf16.msra.mxu0 0
    %1834 = vmatprep.subr.bf16.mxu0 0
    %1835 = vmatpush2.bf16.msra.mxu0 0
    %1836 = vmatprep.subr.bf16.mxu0 0
    %1837 = vmatpush2.bf16.msra.mxu0 0
    %1838 = vmatprep.subr.bf16.mxu0 0
    %1839 = vmatpush2.bf16.msra.mxu0 0
    %1840 = vmatprep.subr.bf16.mxu0 0
    %1841 = vmatpush2.bf16.msra.mxu0 0
    %1842 = vmatprep.subr.bf16.mxu0 0
    %1843 = vmatpush2.bf16.msra.mxu0 0
    %1844 = vmatprep.subr.bf16.mxu0 0
    %1845 = vmatpush2.bf16.msra.mxu0 0
    %1846 = vmatprep.mubr.bf16.mxu0 0
    %1847 = vmatmul.mubr.bf16.gmra.mxu0 %v1406
    %v1848 = vpop.f32.mrf.mxu0
    %v1849 = vadd.f32 %v1809, %v1848
    %v1850 = vpop.f32.mrf.mxu0
    %v1851 = vpop.f32.mrf.mxu0
    %v1852 = vpop.f32.mrf.mxu0
    %1853 = vdwg.mxu0
    %v1854 = vld [vmem:[#allocation7] sm:$0xf]
    %v1855 = vld [vmem:[#allocation7 + $0x4] sm:$0xf]
    %v1856 = vld [vmem:[#allocation7 + $0x8] sm:$0xf]
    %v1857 = vld [vmem:[#allocation7 + $0xc] sm:$0xf]
    %v1858 = vld [vmem:[#allocation7 + $0x10] sm:$0xf]
    %v1859 = vld [vmem:[#allocation7 + $0x14] sm:$0xf]
    %v1860 = vld [vmem:[#allocation7 + $0x18] sm:$0xf]
    %v1861 = vld [vmem:[#allocation7 + $0x1c] sm:$0xf]
    %v1862 = vld [vmem:[#allocation7 + $0x20] sm:$0xf]
    %v1863 = vld [vmem:[#allocation7 + $0x24] sm:$0xf]
    %v1864 = vld [vmem:[#allocation7 + $0x28] sm:$0xf]
    %v1865 = vld [vmem:[#allocation7 + $0x2c] sm:$0xf]
    %v1866 = vld [vmem:[#allocation7 + $0x30] sm:$0xf]
    %v1867 = vld [vmem:[#allocation7 + $0x34] sm:$0xf]
    %v1868 = vld [vmem:[#allocation7 + $0x38] sm:$0xf]
    %v1869 = vld [vmem:[#allocation7 + $0x3c] sm:$0xf]
    %v1870 = vld [vmem:[#allocation7 + $0x40] sm:$0xf]
    %v1871 = vld [vmem:[#allocation7 + $0x44] sm:$0xf]
    %v1872 = vld [vmem:[#allocation7 + $0x48] sm:$0xf]
    %v1873 = vld [vmem:[#allocation7 + $0x4c] sm:$0xf]
    %v1874 = vld [vmem:[#allocation7 + $0x50] sm:$0xf]
    %v1875 = vld [vmem:[#allocation7 + $0x54] sm:$0xf]
    %v1876 = vld [vmem:[#allocation7 + $0x58] sm:$0xf]
    %v1877 = vld [vmem:[#allocation7 + $0x5c] sm:$0xf]
    %v1878 = vld [vmem:[#allocation7 + $0x60] sm:$0xf]
    %v1879 = vld [vmem:[#allocation7 + $0x64] sm:$0xf]
    %v1880 = vld [vmem:[#allocation7 + $0x68] sm:$0xf]
    %v1881 = vld [vmem:[#allocation7 + $0x6c] sm:$0xf]
    %v1882 = vld [vmem:[#allocation7 + $0x70] sm:$0xf]
    %v1883 = vld [vmem:[#allocation7 + $0x74] sm:$0xf]
    %v1884 = vld [vmem:[#allocation7 + $0x78] sm:$0xf]
    %v1885 = vld [vmem:[#allocation7 + $0x7c] sm:$0xf]
    %v1886 = vld [vmem:[#allocation7 + $0x80] sm:$0xf]
    %v1887 = vld [vmem:[#allocation7 + $0x84] sm:$0xf]
    %v1888 = vld [vmem:[#allocation7 + $0x88] sm:$0xf]
    %v1889 = vld [vmem:[#allocation7 + $0x8c] sm:$0xf]
    %v1890 = vld [vmem:[#allocation7 + $0x90] sm:$0xf]
    %v1891 = vld [vmem:[#allocation7 + $0x94] sm:$0xf]
    %v1892 = vld [vmem:[#allocation7 + $0x98] sm:$0xf]
    %v1893 = vld [vmem:[#allocation7 + $0x9c] sm:$0xf]
    %v1894 = vld [vmem:[#allocation7 + $0xa0] sm:$0xf]
    %v1895 = vld [vmem:[#allocation7 + $0xa4] sm:$0xf]
    %v1896 = vld [vmem:[#allocation7 + $0xa8] sm:$0xf]
    %v1897 = vld [vmem:[#allocation7 + $0xac] sm:$0xf]
    %v1898 = vld [vmem:[#allocation7 + $0xb0] sm:$0xf]
    %v1899 = vld [vmem:[#allocation7 + $0xb4] sm:$0xf]
    %v1900 = vld [vmem:[#allocation7 + $0xb8] sm:$0xf]
    %v1901 = vld [vmem:[#allocation7 + $0xbc] sm:$0xf]
    %v1902 = vld [vmem:[#allocation7 + $0xc0] sm:$0xf]
    %v1903 = vld [vmem:[#allocation7 + $0xc4] sm:$0xf]
    %v1904 = vld [vmem:[#allocation7 + $0xc8] sm:$0xf]
    %v1905 = vld [vmem:[#allocation7 + $0xcc] sm:$0xf]
    %v1906 = vld [vmem:[#allocation7 + $0xd0] sm:$0xf]
    %v1907 = vld [vmem:[#allocation7 + $0xd4] sm:$0xf]
    %v1908 = vld [vmem:[#allocation7 + $0xd8] sm:$0xf]
    %v1909 = vld [vmem:[#allocation7 + $0xdc] sm:$0xf]
    %v1910 = vld [vmem:[#allocation7 + $0xe0] sm:$0xf]
    %v1911 = vld [vmem:[#allocation7 + $0xe4] sm:$0xf]
    %v1912 = vld [vmem:[#allocation7 + $0xe8] sm:$0xf]
    %v1913 = vld [vmem:[#allocation7 + $0xec] sm:$0xf]
    %v1914 = vld [vmem:[#allocation7 + $0xf0] sm:$0xf]
    %v1915 = vld [vmem:[#allocation7 + $0xf4] sm:$0xf]
    %v1916 = vld [vmem:[#allocation7 + $0xf8] sm:$0xf]
    %v1917 = vld [vmem:[#allocation7 + $0xfc] sm:$0xf]
    %v1918 = vld [vmem:[#allocation7 + $0x100] sm:$0xf]
    %v1919 = vld [vmem:[#allocation7 + $0x104] sm:$0xf]
    %v1920 = vld [vmem:[#allocation7 + $0x108] sm:$0xf]
    %v1921 = vld [vmem:[#allocation7 + $0x10c] sm:$0xf]
    %v1922 = vld [vmem:[#allocation7 + $0x110] sm:$0xf]
    %v1923 = vld [vmem:[#allocation7 + $0x114] sm:$0xf]
    %v1924 = vld [vmem:[#allocation7 + $0x118] sm:$0xf]
    %v1925 = vld [vmem:[#allocation7 + $0x11c] sm:$0xf]
    %v1926 = vld [vmem:[#allocation7 + $0x120] sm:$0xf]
    %v1927 = vld [vmem:[#allocation7 + $0x124] sm:$0xf]
    %v1928 = vld [vmem:[#allocation7 + $0x128] sm:$0xf]
    %v1929 = vld [vmem:[#allocation7 + $0x12c] sm:$0xf]
    %v1930 = vld [vmem:[#allocation7 + $0x130] sm:$0xf]
    %v1931 = vld [vmem:[#allocation7 + $0x134] sm:$0xf]
    %v1932 = vld [vmem:[#allocation7 + $0x138] sm:$0xf]
    %v1933 = vld [vmem:[#allocation7 + $0x13c] sm:$0xf]
    %v1934 = vld [vmem:[%s8] sm:$0x1]
    %v1936 = vlaneseq
    %v1937 = vshrl.u32 %v1936, 7
    %v1938 = vsub.s32 0, %v1937
    %v1939 = vrot.slane %v1934, %v1938
    %v2021 = vunpack.c.l.b16 %v1854
    %v2022 = vunpack.c.l.b16 %v1855
    %v2023 = vunpack.c.l.b16 %v1856
    %v2024 = vunpack.c.l.b16 %v1857
    %v2025 = vunpack.c.l.b16 %v1858
    %v2026 = vunpack.c.l.b16 %v1859
    %v2027 = vunpack.c.l.b16 %v1860
    %v2028 = vunpack.c.l.b16 %v1861
    %v2029 = vunpack.c.l.b16 %v1862
    %v2030 = vunpack.c.l.b16 %v1863
    %v2031 = vunpack.c.l.b16 %v1864
    %v2032 = vunpack.c.l.b16 %v1865
    %v2033 = vunpack.c.l.b16 %v1866
    %v2034 = vunpack.c.l.b16 %v1867
    %v2035 = vunpack.c.l.b16 %v1868
    %v2036 = vunpack.c.l.b16 %v1869
    %v2037 = vunpack.c.l.b16 %v1870
    %v2038 = vunpack.c.l.b16 %v1871
    %v2039 = vunpack.c.l.b16 %v1872
    %v2040 = vunpack.c.l.b16 %v1873
    %v2041 = vunpack.c.l.b16 %v1874
    %v2042 = vunpack.c.l.b16 %v1875
    %v2043 = vunpack.c.l.b16 %v1876
    %v2044 = vunpack.c.l.b16 %v1877
    %v2045 = vunpack.c.l.b16 %v1878
    %v2046 = vunpack.c.l.b16 %v1879
    %v2047 = vunpack.c.l.b16 %v1880
    %v2048 = vunpack.c.l.b16 %v1881
    %v2049 = vunpack.c.l.b16 %v1882
    %v2050 = vunpack.c.l.b16 %v1883
    %v2051 = vunpack.c.l.b16 %v1884
    %v2052 = vunpack.c.l.b16 %v1885
    %v2053 = vunpack.c.l.b16 %v1886
    %v2054 = vunpack.c.l.b16 %v1887
    %v2055 = vunpack.c.l.b16 %v1888
    %v2056 = vunpack.c.l.b16 %v1889
    %v2057 = vunpack.c.l.b16 %v1890
    %v2058 = vunpack.c.l.b16 %v1891
    %v2059 = vunpack.c.l.b16 %v1892
    %v2060 = vunpack.c.l.b16 %v1893
    %v2061 = vunpack.c.l.b16 %v1894
    %v2062 = vunpack.c.l.b16 %v1895
    %v2063 = vunpack.c.l.b16 %v1896
    %v2064 = vunpack.c.l.b16 %v1897
    %v2065 = vunpack.c.l.b16 %v1898
    %v2066 = vunpack.c.l.b16 %v1899
    %v2067 = vunpack.c.l.b16 %v1900
    %v2068 = vunpack.c.l.b16 %v1901
    %v2069 = vunpack.c.l.b16 %v1902
    %v2070 = vunpack.c.l.b16 %v1903
    %v2071 = vunpack.c.l.b16 %v1904
    %v2072 = vunpack.c.l.b16 %v1905
    %v2073 = vunpack.c.l.b16 %v1906
    %v2074 = vunpack.c.l.b16 %v1907
    %v2075 = vunpack.c.l.b16 %v1908
    %v2076 = vunpack.c.l.b16 %v1909
    %v2077 = vunpack.c.l.b16 %v1910
    %v2078 = vunpack.c.l.b16 %v1911
    %v2079 = vunpack.c.l.b16 %v1912
    %v2080 = vunpack.c.l.b16 %v1913
    %v2081 = vunpack.c.l.b16 %v1914
    %v2082 = vunpack.c.l.b16 %v1915
    %v2083 = vunpack.c.l.b16 %v1916
    %v2084 = vunpack.c.l.b16 %v1917
    %v2085 = vunpack.c.l.b16 %v1918
    %v2086 = vunpack.c.l.b16 %v1919
    %v2087 = vunpack.c.l.b16 %v1920
    %v2088 = vunpack.c.l.b16 %v1921
    %v2089 = vunpack.c.l.b16 %v1922
    %v2090 = vunpack.c.l.b16 %v1923
    %v2091 = vunpack.c.l.b16 %v1924
    %v2092 = vunpack.c.l.b16 %v1925
    %v2093 = vunpack.c.l.b16 %v1926
    %v2094 = vunpack.c.l.b16 %v1927
    %v2095 = vunpack.c.l.b16 %v1928
    %v2096 = vunpack.c.l.b16 %v1929
    %v2097 = vunpack.c.l.b16 %v1930
    %v2098 = vunpack.c.l.b16 %v1931
    %v2099 = vunpack.c.l.b16 %v1932
    %v2100 = vunpack.c.l.b16 %v1933
    %v2101 = vpack.c.b16 %v2022, %v2021
    %v2102 = vpack.c.b16 %v2024, %v2023
    %v2103 = vpack.c.b16 %v2026, %v2025
    %v2104 = vpack.c.b16 %v2028, %v2027
    %v2105 = vpack.c.b16 %v2030, %v2029
    %v2106 = vpack.c.b16 %v2032, %v2031
    %v2107 = vpack.c.b16 %v2034, %v2033
    %v2108 = vpack.c.b16 %v2036, %v2035
    %v2109 = vpack.c.b16 %v2038, %v2037
    %v2110 = vpack.c.b16 %v2040, %v2039
    %v2111 = vpack.c.b16 %v2042, %v2041
    %v2112 = vpack.c.b16 %v2044, %v2043
    %v2113 = vpack.c.b16 %v2046, %v2045
    %v2114 = vpack.c.b16 %v2048, %v2047
    %v2115 = vpack.c.b16 %v2050, %v2049
    %v2116 = vpack.c.b16 %v2052, %v2051
    %v2117 = vpack.c.b16 %v2054, %v2053
    %v2118 = vpack.c.b16 %v2056, %v2055
    %v2119 = vpack.c.b16 %v2058, %v2057
    %v2120 = vpack.c.b16 %v2060, %v2059
    %v2121 = vpack.c.b16 %v2062, %v2061
    %v2122 = vpack.c.b16 %v2064, %v2063
    %v2123 = vpack.c.b16 %v2066, %v2065
    %v2124 = vpack.c.b16 %v2068, %v2067
    %v2125 = vpack.c.b16 %v2070, %v2069
    %v2126 = vpack.c.b16 %v2072, %v2071
    %v2127 = vpack.c.b16 %v2074, %v2073
    %v2128 = vpack.c.b16 %v2076, %v2075
    %v2129 = vpack.c.b16 %v2078, %v2077
    %v2130 = vpack.c.b16 %v2080, %v2079
    %v2131 = vpack.c.b16 %v2082, %v2081
    %v2132 = vpack.c.b16 %v2084, %v2083
    %v2133 = vpack.c.b16 %v2086, %v2085
    %v2134 = vpack.c.b16 %v2088, %v2087
    %v2135 = vpack.c.b16 %v2090, %v2089
    %v2136 = vpack.c.b16 %v2092, %v2091
    %v2137 = vpack.c.b16 %v2094, %v2093
    %v2138 = vpack.c.b16 %v2096, %v2095
    %v2139 = vpack.c.b16 %v2098, %v2097
    %v2140 = vpack.c.b16 %v2100, %v2099
    %2181 = vmatprep.subr.bf16.mxu0 0
    %2182 = vmatpush1.bf16.msra.mxu0 %v2108
    %2183 = vmatprep.subr.bf16.mxu0 0
    %2184 = vmatpush1.bf16.msra.mxu0 %v2107
    %2185 = vmatprep.subr.bf16.mxu0 0
    %2186 = vmatpush1.bf16.msra.mxu0 %v2106
    %2187 = vmatprep.subr.bf16.mxu0 0
    %2188 = vmatpush1.bf16.msra.mxu0 %v2105
    %2189 = vmatprep.subr.bf16.mxu0 0
    %2190 = vmatpush1.bf16.msra.mxu0 %v2104
    %2191 = vmatprep.subr.bf16.mxu0 0
    %2192 = vmatpush1.bf16.msra.mxu0 %v2103
    %2193 = vmatprep.subr.bf16.mxu0 0
    %2194 = vmatpush1.bf16.msra.mxu0 %v2102
    %2195 = vmatprep.subr.bf16.mxu0 0
    %2196 = vmatpush1.bf16.msra.mxu0 %v2101
    %2197 = vmatprep.subr.bf16.mxu0 0
    %2198 = vmatpush2.bf16.msra.mxu0 %v2116
    %2199 = vmatprep.subr.bf16.mxu0 0
    %2200 = vmatpush2.bf16.msra.mxu0 %v2115
    %2201 = vmatprep.subr.bf16.mxu0 0
    %2202 = vmatpush2.bf16.msra.mxu0 %v2114
    %2203 = vmatprep.subr.bf16.mxu0 0
    %2204 = vmatpush2.bf16.msra.mxu0 %v2113
    %2205 = vmatprep.subr.bf16.mxu0 0
    %2206 = vmatpush2.bf16.msra.mxu0 %v2112
    %2207 = vmatprep.subr.bf16.mxu0 0
    %2208 = vmatpush2.bf16.msra.mxu0 %v2111
    %2209 = vmatprep.subr.bf16.mxu0 0
    %2210 = vmatpush2.bf16.msra.mxu0 %v2110
    %2211 = vmatprep.subr.bf16.mxu0 0
    %2212 = vmatpush2.bf16.msra.mxu0 %v2109
    %2213 = vmatprep.mubr.bf16.mxu0 %v1403
    %2214 = vmatmul.mubr.bf16.gmra.mxu0 %v1402
    %v2215 = vpop.f32.mrf.mxu0
    %v2216 = vadd.f32 %v1939, %v2215
    %v2217 = vpop.f32.mrf.mxu0
    %v2218 = vpop.f32.mrf.mxu0
    %v2219 = vpop.f32.mrf.mxu0
    %2220 = vdwg.mxu0
    %2221 = vmatprep.subr.bf16.mxu0 0
    %2222 = vmatpush1.bf16.msra.mxu0 %v2124
    %2223 = vmatprep.subr.bf16.mxu0 0
    %2224 = vmatpush1.bf16.msra.mxu0 %v2123
    %2225 = vmatprep.subr.bf16.mxu0 0
    %2226 = vmatpush1.bf16.msra.mxu0 %v2122
    %2227 = vmatprep.subr.bf16.mxu0 0
    %2228 = vmatpush1.bf16.msra.mxu0 %v2121
    %2229 = vmatprep.subr.bf16.mxu0 0
    %2230 = vmatpush1.bf16.msra.mxu0 %v2120
    %2231 = vmatprep.subr.bf16.mxu0 0
    %2232 = vmatpush1.bf16.msra.mxu0 %v2119
    %2233 = vmatprep.subr.bf16.mxu0 0
    %2234 = vmatpush1.bf16.msra.mxu0 %v2118
    %2235 = vmatprep.subr.bf16.mxu0 0
    %2236 = vmatpush1.bf16.msra.mxu0 %v2117
    %2237 = vmatprep.subr.bf16.mxu0 0
    %2238 = vmatpush2.bf16.msra.mxu0 %v2132
    %2239 = vmatprep.subr.bf16.mxu0 0
    %2240 = vmatpush2.bf16.msra.mxu0 %v2131
    %2241 = vmatprep.subr.bf16.mxu0 0
    %2242 = vmatpush2.bf16.msra.mxu0 %v2130
    %2243 = vmatprep.subr.bf16.mxu0 0
    %2244 = vmatpush2.bf16.msra.mxu0 %v2129
    %2245 = vmatprep.subr.bf16.mxu0 0
    %2246 = vmatpush2.bf16.msra.mxu0 %v2128
    %2247 = vmatprep.subr.bf16.mxu0 0
    %2248 = vmatpush2.bf16.msra.mxu0 %v2127
    %2249 = vmatprep.subr.bf16.mxu0 0
    %2250 = vmatpush2.bf16.msra.mxu0 %v2126
    %2251 = vmatprep.subr.bf16.mxu0 0
    %2252 = vmatpush2.bf16.msra.mxu0 %v2125
    %2253 = vmatprep.mubr.bf16.mxu0 %v1405
    %2254 = vmatmul.mubr.bf16.gmra.mxu0 %v1404
    %v2255 = vpop.f32.mrf.mxu0
    %v2256 = vadd.f32 %v2216, %v2255
    %v2257 = vpop.f32.mrf.mxu0
    %v2258 = vpop.f32.mrf.mxu0
    %v2259 = vpop.f32.mrf.mxu0
    %2260 = vdwg.mxu0
    %2261 = vmatprep.subr.bf16.mxu0 0
    %2262 = vmatpush1.bf16.msra.mxu0 %v2140
    %2263 = vmatprep.subr.bf16.mxu0 0
    %2264 = vmatpush1.bf16.msra.mxu0 %v2139
    %2265 = vmatprep.subr.bf16.mxu0 0
    %2266 = vmatpush1.bf16.msra.mxu0 %v2138
    %2267 = vmatprep.subr.bf16.mxu0 0
    %2268 = vmatpush1.bf16.msra.mxu0 %v2137
    %2269 = vmatprep.subr.bf16.mxu0 0
    %2270 = vmatpush1.bf16.msra.mxu0 %v2136
    %2271 = vmatprep.subr.bf16.mxu0 0
    %2272 = vmatpush1.bf16.msra.mxu0 %v2135
    %2273 = vmatprep.subr.bf16.mxu0 0
    %2274 = vmatpush1.bf16.msra.mxu0 %v2134
    %2275 = vmatprep.subr.bf16.mxu0 0
    %2276 = vmatpush1.bf16.msra.mxu0 %v2133
    %2277 = vmatprep.subr.bf16.mxu0 0
    %2278 = vmatpush2.bf16.msra.mxu0 0
    %2279 = vmatprep.subr.bf16.mxu0 0
    %2280 = vmatpush2.bf16.msra.mxu0 0
    %2281 = vmatprep.subr.bf16.mxu0 0
    %2282 = vmatpush2.bf16.msra.mxu0 0
    %2283 = vmatprep.subr.bf16.mxu0 0
    %2284 = vmatpush2.bf16.msra.mxu0 0
    %2285 = vmatprep.subr.bf16.mxu0 0
    %2286 = vmatpush2.bf16.msra.mxu0 0
    %2287 = vmatprep.subr.bf16.mxu0 0
    %2288 = vmatpush2.bf16.msra.mxu0 0
    %2289 = vmatprep.subr.bf16.mxu0 0
    %2290 = vmatpush2.bf16.msra.mxu0 0
    %2291 = vmatprep.subr.bf16.mxu0 0
    %2292 = vmatpush2.bf16.msra.mxu0 0
    %2293 = vmatprep.mubr.bf16.mxu0 0
    %2294 = vmatmul.mubr.bf16.gmra.mxu0 %v1406
    %v2295 = vpop.f32.mrf.mxu0
    %v2296 = vadd.f32 %v2256, %v2295
    %v2297 = vpop.f32.mrf.mxu0
    %v2298 = vpop.f32.mrf.mxu0
    %v2299 = vpop.f32.mrf.mxu0
    %2300 = vdwg.mxu0
    %v2301 = vmax.f32 %v2296, 0.0
    %vm2302 = vcmp.ne.f32.partialorder %v2296, %v2296
    %v2303 = vadd.f32 %v2296, 0.0
    %v2304 = vand.u32 2147483647, %v2296
    %v2305 = vsub.f32 0.0, %v2304
    %v2306 = vmul.f32 %v2305, 1.442695
    %v2307 = vpow.pop %v2306
    %v2308 = vadd.f32 %v2307, 1.0
    %v2309 = vlog2.pop %v2308
    %v2310 = vmul.f32 %v2309, 0.6931472
    %v2311 = vmul.f32 -0.5, %v2307
    %v2312 = vadd.f32 %v2311, 1.0
    %v2313 = vmul.f32 %v2312, %v2307
    %v2314 = vand.u32 2147483647, %v2307
    %vm2315 = vcmp.lt.f32.partialorder %v2314, 0.0004427343
    %v2316 = vsel %vm2315, %v2313, %v2310
    %v2317 = vadd.f32 %v2301, %v2316
    %v2318 = vsel %vm2302, %v2303, %v2317
    %v2319 = vld [vmem:[%s9] sm:$0xff]
    %v2320 = vmul.f32 %v2318, %v2319
    %v2321 = vadd.f32 %v1849, %v2320
    %v2322 = vmul.f32 %v2319, -0.5
    %v2323 = vmul.f32 %v2322, %v2319
    %v2324 = vlog2.pop %v2318
    %v2325 = vmul.f32 %v2324, 0.6931472
    %v2326 = vsub.f32 %v2323, %v2325
    %v2327 = vsub.f32 %v2326, 0.9189385
    %v2328 = vtanh.pop %v2321
    %v2329 = vtanh.pop %v2328
    %v2330 = vmul.f32 %v2329, %v2329
    %v2331 = vsub.f32 1.0, %v2330
    %v2332 = vadd.f32 %v2331, 1e-07
    %v2333 = vlog2.pop %v2332
    %v2334 = vmul.f32 %v2333, 0.6931472
    %v2335 = vsub.f32 %v2327, %v2334
    %2336 = vst [vmem:[%s10] sm:$0xff] %v2328
    %2337 = vst [vmem:[%s11] sm:$0xff] %v2335
    // Predicated region
    $region58: #{actor_net_forward.1} parent=1 // pred_check
      _
    $region59: #{actor_net_forward.1} parent=1 // pred_check_branch
      %2339 = sbr.rel (0) target = $region61
    $region60: #{actor_net_forward.1} parent=1 // pred_region
      _
    $region61: #{actor_net_forward.1} parent=1 // pred_fallthru
      _
    // Predicated region
    $region62: #{actor_net_forward.1} parent=1 // pred_check
      _
    $region63: #{actor_net_forward.1} parent=1 // pred_check_branch
      %2341 = sbr.rel (0) target = $region65
    $region64: #{actor_net_forward.1} parent=1 // pred_region
      _
    $region65: #{actor_net_forward.1} parent=1 // pred_fallthru
      _
    // Predicated region
    $region66: #{actor_net_forward.1} parent=1 // pred_check
      _
    $region67: #{actor_net_forward.1} parent=1 // pred_check_branch
      %2343 = sbr.rel (0) target = $region69
    $region68: #{actor_net_forward.1} parent=1 // pred_region
      _
    $region69: #{actor_net_forward.1} parent=1 // pred_fallthru
      _
    // Predicated region
    $region70: #{actor_net_forward.1} parent=1 // pred_check
      _
    $region71: #{actor_net_forward.1} parent=1 // pred_check_branch
      %2345 = sbr.rel (0) target = $region73
    $region72: #{actor_net_forward.1} parent=1 // pred_region
      _
    $region73: #{actor_net_forward.1} parent=1 // pred_fallthru
      _
    %2346 = vsyncpa [#allocation3], 1
    %2347 = vsyncpa [#allocation5], 1
    %2348 = vsyncpa [#allocation8], 1

</llo_original>
